<compile_context>
chip_gen: v6e
topology: v6e:2x2x1
jax: 0.10.0
libtpu: 0.0.40
codegen_flags: <defaults>
</compile_context>

<pallas_src>
import functools

import jax
import jax.numpy as jnp
from jax.experimental import pallas as pl
from jax.experimental.pallas import tpu as pltpu

NUM_KPTS = 8
KPS_SIZE = NUM_KPTS * 2          # 16
KPS_PWSET = KPS_SIZE ** 2        # 256

_LANE = 128                      # TPU lane width (last-dim vreg extent)


def _round_up(n, m):
    return ((n + m - 1) // m) * m


# -----------------------------------------------------------------------------
# Kernel: one batch tile of the transposed MLP.  All activations are
# (features, tb) so the batch sits on the lane axis; the output row is (1, tb).
# -----------------------------------------------------------------------------
def _mlp_kernel_t(x_ref, w1, b1, w2, b2, w3, b3, w4, b4, w56, b56, o_ref):
    bf16 = jnp.bfloat16
    f32 = jnp.float32

    # Layer 1: (256,16)@(16,tb).  K=16 underfills the MXU contraction but is
    # ~2% of total FLOPs -> not worth padding.
    h = jnp.dot(w1[...], x_ref[...].astype(bf16),
                preferred_element_type=f32) + b1[...]
    h = jnp.maximum(h, 0.0)
    h = jnp.dot(w2[...], h.astype(bf16), preferred_element_type=f32) + b2[...]
    h = jnp.maximum(h, 0.0)
    h = jnp.dot(w3[...], h.astype(bf16), preferred_element_type=f32) + b3[...]
    h = jnp.maximum(h, 0.0)
    h = jnp.dot(w4[...], h.astype(bf16), preferred_element_type=f32) + b4[...]
    h = jnp.maximum(h, 0.0)

    # Layers 5+6 fused offline (affine o affine is exact).  Single output
    # column -> broadcast-multiply (VPU) + sublane reduce (XLU); an N=1 MXU
    # pass would waste 255/256 output columns.
    logits = jnp.sum(h * w56[...], axis=0, keepdims=True) + b56[...]   # (1, tb)
    o_ref[...] = jax.nn.sigmoid(logits).astype(o_ref.dtype)


# -----------------------------------------------------------------------------
# Tiling: lane-aligned tiles, bounded padding, >= 2 (even) grid steps for v7x
# megacore whenever the batch allows it.
# -----------------------------------------------------------------------------
def _choose_tiles(batch, tile_b):
    tile_b = max(int(tile_b), _LANE)
    padded = _round_up(batch, _LANE)               # lane-dense minimum padding
    n_tiles = pl.cdiv(padded, tile_b)
    if padded >= 2 * _LANE:
        n_tiles = max(n_tiles, 2)                  # give both v7x TCs work
        n_tiles += n_tiles % 2                     # even split across 2 TCs
    tb = _round_up(pl.cdiv(padded, n_tiles), _LANE)
    padded = tb * n_tiles                          # waste bounded by n_tiles*128
    return tb, n_tiles, padded


@functools.partial(jax.jit, static_argnames=("tile_b",))
def _pallas_forward(x, packed_params, tile_b=2048):
    """x: (B, KPS_SIZE) f32; packed_params from pack_params()."""
    batch = x.shape[0]
    tb, n_tiles, padded = _choose_tiles(batch, tile_b)

    # Transpose + pad in the wrapper (cheap layout plumbing) so every block the
    # kernel touches is lane-dense.
    xt = x.T                                                     # (16, B)
    if padded != batch:
        xt = jnp.pad(xt, ((0, 0), (0, padded - batch)))          # (16, padded)

    def const_spec(a):
        # Full-array block, constant block index -> stays resident in VMEM.
        return pl.BlockSpec(a.shape, lambda i: (0,) * a.ndim)

    weight_specs = [const_spec(p) for p in packed_params]

    flops = 2 * padded * (KPS_SIZE * KPS_PWSET
                          + 3 * KPS_PWSET * KPS_PWSET
                          + KPS_PWSET)
    bytes_accessed = (sum(int(p.size) * p.dtype.itemsize for p in packed_params)
                      + padded * (KPS_SIZE + 1) * 4)

    out = pl.pallas_call(
        _mlp_kernel_t,
        out_shape=jax.ShapeDtypeStruct((1, padded), jnp.float32),
        grid=(n_tiles,),
        in_specs=[pl.BlockSpec((KPS_SIZE, tb), lambda i: (0, i))] + weight_specs,
        out_specs=pl.BlockSpec((1, tb), lambda i: (0, i)),       # lane-dense out
        compiler_params=pltpu.CompilerParams(
            dimension_semantics=("parallel",),      # megacore sharding on v7x
            vmem_limit_bytes=32 * 1024 * 1024,      # legal on v5e/v6e/v7x
        ),
        cost_estimate=pl.CostEstimate(
            flops=flops,
            transcendentals=2 * padded,             # sigmoid ~ exp + reciprocal
            bytes_accessed=bytes_accessed),
    )(xt, *packed_params)

    return out[0, :batch].reshape(batch, 1)


def _xla_forward(x, packed_params):
    """Plain fused-XLA forward with the same math as the kernel (tiny batches)."""
    return reference_forward_packed(x, packed_params)


def neural_network_forward(x, packed_params, tile_b=2048, use_pallas=None):
    """Dispatcher: tiny batches are pure launch/step overhead in Pallas."""
    if use_pallas is None:
        use_pallas = x.shape[0] >= 512
    if use_pallas:
        return _pallas_forward(x, packed_params, tile_b=tile_b)
    return _xla_forward(x, packed_params)


# -----------------------------------------------------------------------------
# Parameter construction / packing / references
# -----------------------------------------------------------------------------
def init_params(key):
    """PyTorch nn.Linear default init (U(-k, k), k = 1/sqrt(fan_in)).

    Weights stored as (in_features, out_features); biases as (1, out_features).
    Returns the full-precision, unfused 6-layer parameter tuple.
    """
    dims = [(KPS_SIZE, KPS_PWSET)] + [(KPS_PWSET, KPS_PWSET)] * 4 + [(KPS_PWSET, 1)]
    params = []
    for fan_in, fan_out in dims:
        key, wk, bk = jax.random.split(key, 3)
        bound = 1.0 / (fan_in ** 0.5)
        w = jax.random.uniform(wk, (fan_in, fan_out), jnp.float32, -bound, bound)
        b = jax.random.uniform(bk, (1, fan_out), jnp.float32, -bound, bound)
        params += [w, b]
    return tuple(params)


def pack_params(params):
    """Transpose to (out, in) layout, fuse layers 5+6 (exact), cast matmul
    weights to bf16.  Biases become (out, 1) columns for the transposed path."""
    w1, b1, w2, b2, w3, b3, w4, b4, w5, b5, w6, b6 = params
    w56 = w5 @ w6                      # (256, 1) column, f32 (VPU operand)
    b56 = b5 @ w6 + b6                 # (1, 1)
    bf16 = jnp.bfloat16
    return (w1.T.astype(bf16), b1.T,
            w2.T.astype(bf16), b2.T,
            w3.T.astype(bf16), b3.T,
            w4.T.astype(bf16), b4.T,
            w56.astype(jnp.float32), b56.astype(jnp.float32))


def reference_forward_f32(x, params):
    """Pure-JAX f32 reference of the original (unfused) module."""
    w1, b1, w2, b2, w3, b3, w4, b4, w5, b5, w6, b6 = params
    h = jnp.maximum(x @ w1 + b1, 0.0)
    h = jnp.maximum(h @ w2 + b2, 0.0)
    h = jnp.maximum(h @ w3 + b3, 0.0)
    h = jnp.maximum(h @ w4 + b4, 0.0)
    h = h @ w5 + b5
    return jax.nn.sigmoid(h @ w6 + b6)


def reference_forward_packed(x, packed):
    """Pure-JAX reference mirroring the kernel math (transposed, bf16, fused)."""
    w1t, b1t, w2t, b2t, w3t, b3t, w4t, b4t, w56, b56 = packed
    bf16, f32 = jnp.bfloat16, jnp.float32
    h = x.T                                                            # (16, B)
    h = jnp.maximum(jnp.dot(w1t, h.astype(bf16), preferred_element_type=f32) + b1t, 0.0)
    h = jnp.maximum(jnp.dot(w2t, h.astype(bf16), preferred_element_type=f32) + b2t, 0.0)
    h = jnp.maximum(jnp.dot(w3t, h.astype(bf16), preferred_element_type=f32) + b3t, 0.0)
    h = jnp.maximum(jnp.dot(w4t, h.astype(bf16), preferred_element_type=f32) + b4t, 0.0)
    logits = jnp.sum(h * w56, axis=0, keepdims=True) + b56             # (1, B)
    return jax.nn.sigmoid(logits).T                                    # (B, 1)


# -----------------------------------------------------------------------------
# Self-test
# -----------------------------------------------------------------------------
if __name__ == "__main__":
    key = jax.random.PRNGKey(0)
    key, xk, pk = jax.random.split(key, 3)

    params = init_params(pk)
    packed = pack_params(params)

    # Exercise the Pallas kernel at (a) a tiny single-tile batch and (b) a
    # multi-tile batch (2 grid steps, lane-dense (1, tb) output blocks).
    for batch in (8, 384):
        x = jax.random.normal(jax.random.fold_in(xk, batch),
                              (batch, KPS_SIZE), jnp.float32)
        out = jax.block_until_ready(
            neural_network_forward(x, packed, use_pallas=True))
        assert out.shape == (batch, 1), out.shape

        ref_packed = reference_forward_packed(x, packed)
        assert jnp.allclose(out, ref_packed, atol=1e-4, rtol=1e-4), (
            f"batch={batch}: mismatch vs packed ref, max abs diff "
            f"{jnp.max(jnp.abs(out - ref_packed))}")

        ref_f32 = reference_forward_f32(x, params)
        assert jnp.allclose(out, ref_f32, atol=2e-2), (
            f"batch={batch}: mismatch vs f32 ref, max abs diff "
            f"{jnp.max(jnp.abs(out - ref_f32))}")

    # Dispatcher sanity: tiny batch auto-routes to the fused XLA path.
    x_small = jax.random.normal(jax.random.fold_in(xk, 1), (4, KPS_SIZE), jnp.float32)
    out_small = jax.block_until_ready(neural_network_forward(x_small, packed))
    assert out_small.shape == (4, 1)

    print("KERNEL_OK")
</pallas_src>

<mosaic_0001>
module attributes {stable_mosaic.version = 11 : i64} {
  func.func @_mlp_kernel_t(%arg0: i32, %arg1: memref<16x128xf32, #tpu.memory_space<vmem>>, %arg2: memref<256x16xbf16, #tpu.memory_space<vmem>>, %arg3: memref<256x1xf32, #tpu.memory_space<vmem>>, %arg4: memref<256x256xbf16, #tpu.memory_space<vmem>>, %arg5: memref<256x1xf32, #tpu.memory_space<vmem>>, %arg6: memref<256x256xbf16, #tpu.memory_space<vmem>>, %arg7: memref<256x1xf32, #tpu.memory_space<vmem>>, %arg8: memref<256x256xbf16, #tpu.memory_space<vmem>>, %arg9: memref<256x1xf32, #tpu.memory_space<vmem>>, %arg10: memref<256x1xf32, #tpu.memory_space<vmem>>, %arg11: memref<1x1xf32, #tpu.memory_space<vmem>>, %arg12: memref<1x128xf32, #tpu.memory_space<vmem>>) attributes {dimension_semantics = [#tpu.dimension_semantics<parallel>], iteration_bounds = array<i64: 1>, scalar_prefetch = 0 : i64, scratch_operands = 0 : i64, tpu.core_type = #tpu.core_type<tc>, window_params = [{transform_indices = @transform_0, window_bounds = array<i64: 16, 128>}, {pipeline_mode = #tpu.pipeline_mode<synchronous>, transform_indices = @transform_1, window_bounds = array<i64: 256, 16>}, {pipeline_mode = #tpu.pipeline_mode<synchronous>, transform_indices = @transform_2, window_bounds = array<i64: 256, 1>}, {pipeline_mode = #tpu.pipeline_mode<synchronous>, transform_indices = @transform_3, window_bounds = array<i64: 256, 256>}, {pipeline_mode = #tpu.pipeline_mode<synchronous>, transform_indices = @transform_4, window_bounds = array<i64: 256, 1>}, {pipeline_mode = #tpu.pipeline_mode<synchronous>, transform_indices = @transform_5, window_bounds = array<i64: 256, 256>}, {pipeline_mode = #tpu.pipeline_mode<synchronous>, transform_indices = @transform_6, window_bounds = array<i64: 256, 1>}, {pipeline_mode = #tpu.pipeline_mode<synchronous>, transform_indices = @transform_7, window_bounds = array<i64: 256, 256>}, {pipeline_mode = #tpu.pipeline_mode<synchronous>, transform_indices = @transform_8, window_bounds = array<i64: 256, 1>}, {pipeline_mode = #tpu.pipeline_mode<synchronous>, transform_indices = @transform_9, window_bounds = array<i64: 256, 1>}, {pipeline_mode = #tpu.pipeline_mode<synchronous>, transform_indices = @transform_10, window_bounds = array<i64: 1, 1>}, {transform_indices = @transform_11, window_bounds = array<i64: 1, 128>}]} {
    %c0 = arith.constant 0 : index
    %c0_0 = arith.constant 0 : index
    %0 = vector.load %arg2[%c0, %c0_0] : memref<256x16xbf16, #tpu.memory_space<vmem>>, vector<256x16xbf16>
    %c0_1 = arith.constant 0 : index
    %c0_2 = arith.constant 0 : index
    %1 = vector.load %arg1[%c0_1, %c0_2] : memref<16x128xf32, #tpu.memory_space<vmem>>, vector<16x128xf32>
    %2 = arith.truncf %1 : vector<16x128xf32> to vector<16x128xbf16>
    %cst = arith.constant dense<0.000000e+00> : vector<256x128xf32>
    %3 = tpu.matmul %0, %2, %cst {dimension_numbers = #tpu.dot_dimension_numbers<[1], [0], [0], [1], [0, 0, 1, 1], [], []>} : vector<256x16xbf16>, vector<16x128xbf16>, vector<256x128xf32> -> vector<256x128xf32>
    %c0_3 = arith.constant 0 : index
    %c0_4 = arith.constant 0 : index
    %4 = vector.load %arg3[%c0_3, %c0_4] : memref<256x1xf32, #tpu.memory_space<vmem>>, vector<256x1xf32>
    %5 = vector.broadcast %4 : vector<256x1xf32> to vector<256x128xf32>
    %6 = arith.addf %3, %5 : vector<256x128xf32>
    %cst_5 = arith.constant 0.000000e+00 : f32
    %7 = vector.broadcast %cst_5 : f32 to vector<256x128xf32>
    %8 = arith.maximumf %6, %7 : vector<256x128xf32>
    %c0_6 = arith.constant 0 : index
    %c0_7 = arith.constant 0 : index
    %9 = vector.load %arg4[%c0_6, %c0_7] : memref<256x256xbf16, #tpu.memory_space<vmem>>, vector<256x256xbf16>
    %10 = arith.truncf %8 : vector<256x128xf32> to vector<256x128xbf16>
    %cst_8 = arith.constant dense<0.000000e+00> : vector<256x128xf32>
    %11 = tpu.matmul %9, %10, %cst_8 {dimension_numbers = #tpu.dot_dimension_numbers<[1], [0], [0], [1], [0, 0, 1, 1], [], []>} : vector<256x256xbf16>, vector<256x128xbf16>, vector<256x128xf32> -> vector<256x128xf32>
    %c0_9 = arith.constant 0 : index
    %c0_10 = arith.constant 0 : index
    %12 = vector.load %arg5[%c0_9, %c0_10] : memref<256x1xf32, #tpu.memory_space<vmem>>, vector<256x1xf32>
    %13 = vector.broadcast %12 : vector<256x1xf32> to vector<256x128xf32>
    %14 = arith.addf %11, %13 : vector<256x128xf32>
    %cst_11 = arith.constant 0.000000e+00 : f32
    %15 = vector.broadcast %cst_11 : f32 to vector<256x128xf32>
    %16 = arith.maximumf %14, %15 : vector<256x128xf32>
    %c0_12 = arith.constant 0 : index
    %c0_13 = arith.constant 0 : index
    %17 = vector.load %arg6[%c0_12, %c0_13] : memref<256x256xbf16, #tpu.memory_space<vmem>>, vector<256x256xbf16>
    %18 = arith.truncf %16 : vector<256x128xf32> to vector<256x128xbf16>
    %cst_14 = arith.constant dense<0.000000e+00> : vector<256x128xf32>
    %19 = tpu.matmul %17, %18, %cst_14 {dimension_numbers = #tpu.dot_dimension_numbers<[1], [0], [0], [1], [0, 0, 1, 1], [], []>} : vector<256x256xbf16>, vector<256x128xbf16>, vector<256x128xf32> -> vector<256x128xf32>
    %c0_15 = arith.constant 0 : index
    %c0_16 = arith.constant 0 : index
    %20 = vector.load %arg7[%c0_15, %c0_16] : memref<256x1xf32, #tpu.memory_space<vmem>>, vector<256x1xf32>
    %21 = vector.broadcast %20 : vector<256x1xf32> to vector<256x128xf32>
    %22 = arith.addf %19, %21 : vector<256x128xf32>
    %cst_17 = arith.constant 0.000000e+00 : f32
    %23 = vector.broadcast %cst_17 : f32 to vector<256x128xf32>
    %24 = arith.maximumf %22, %23 : vector<256x128xf32>
    %c0_18 = arith.constant 0 : index
    %c0_19 = arith.constant 0 : index
    %25 = vector.load %arg8[%c0_18, %c0_19] : memref<256x256xbf16, #tpu.memory_space<vmem>>, vector<256x256xbf16>
    %26 = arith.truncf %24 : vector<256x128xf32> to vector<256x128xbf16>
    %cst_20 = arith.constant dense<0.000000e+00> : vector<256x128xf32>
    %27 = tpu.matmul %25, %26, %cst_20 {dimension_numbers = #tpu.dot_dimension_numbers<[1], [0], [0], [1], [0, 0, 1, 1], [], []>} : vector<256x256xbf16>, vector<256x128xbf16>, vector<256x128xf32> -> vector<256x128xf32>
    %c0_21 = arith.constant 0 : index
    %c0_22 = arith.constant 0 : index
    %28 = vector.load %arg9[%c0_21, %c0_22] : memref<256x1xf32, #tpu.memory_space<vmem>>, vector<256x1xf32>
    %29 = vector.broadcast %28 : vector<256x1xf32> to vector<256x128xf32>
    %30 = arith.addf %27, %29 : vector<256x128xf32>
    %cst_23 = arith.constant 0.000000e+00 : f32
    %31 = vector.broadcast %cst_23 : f32 to vector<256x128xf32>
    %32 = arith.maximumf %30, %31 : vector<256x128xf32>
    %c0_24 = arith.constant 0 : index
    %c0_25 = arith.constant 0 : index
    %33 = vector.load %arg10[%c0_24, %c0_25] : memref<256x1xf32, #tpu.memory_space<vmem>>, vector<256x1xf32>
    %34 = vector.broadcast %33 : vector<256x1xf32> to vector<256x128xf32>
    %35 = arith.mulf %32, %34 : vector<256x128xf32>
    %cst_26 = arith.constant dense<0.000000e+00> : vector<128xf32>
    %36 = vector.multi_reduction <add>, %35, %cst_26 [0] : vector<256x128xf32> to vector<128xf32>
    %37 = vector.shape_cast %36 : vector<128xf32> to vector<1x128xf32>
    %c0_27 = arith.constant 0 : index
    %c0_28 = arith.constant 0 : index
    %38 = vector.load %arg11[%c0_27, %c0_28] : memref<1x1xf32, #tpu.memory_space<vmem>>, vector<1x1xf32>
    %39 = vector.broadcast %38 : vector<1x1xf32> to vector<1x128xf32>
    %40 = arith.addf %37, %39 : vector<1x128xf32>
    %41 = arith.negf %40 : vector<1x128xf32>
    %42 = math.exp %41 : vector<1x128xf32>
    %cst_29 = arith.constant 1.000000e+00 : f32
    %43 = vector.broadcast %cst_29 : f32 to vector<1x128xf32>
    %44 = arith.addf %43, %42 : vector<1x128xf32>
    %45 = arith.divf %43, %44 : vector<1x128xf32>
    %c0_30 = arith.constant 0 : index
    %c0_31 = arith.constant 0 : index
    %46 = vector.load %arg12[%c0_30, %c0_31] : memref<1x128xf32, #tpu.memory_space<vmem>>, vector<1x128xf32>
    tpu.vector_store %arg12[%c0_30, %c0_31], %45 {strides = array<i32>} : memref<1x128xf32, #tpu.memory_space<vmem>>, vector<1x128xf32>,
    return
  }
  func.func @transform_0(%arg0: i32) -> (i32, i32) {
    %c0_i32 = arith.constant 0 : i32
    %c0_i32_0 = arith.constant 0 : i32
    return %c0_i32, %arg0 : i32, i32
  }
  func.func @transform_1(%arg0: i32) -> (i32, i32) {
    %c0_i32 = arith.constant 0 : i32
    %c0_i32_0 = arith.constant 0 : i32
    %c0_i32_1 = arith.constant 0 : i32
    return %c0_i32, %c0_i32_0 : i32, i32
  }
  func.func @transform_2(%arg0: i32) -> (i32, i32) {
    %c0_i32 = arith.constant 0 : i32
    %c0_i32_0 = arith.constant 0 : i32
    %c0_i32_1 = arith.constant 0 : i32
    return %c0_i32, %c0_i32_0 : i32, i32
  }
  func.func @transform_3(%arg0: i32) -> (i32, i32) {
    %c0_i32 = arith.constant 0 : i32
    %c0_i32_0 = arith.constant 0 : i32
    %c0_i32_1 = arith.constant 0 : i32
    return %c0_i32, %c0_i32_0 : i32, i32
  }
  func.func @transform_4(%arg0: i32) -> (i32, i32) {
    %c0_i32 = arith.constant 0 : i32
    %c0_i32_0 = arith.constant 0 : i32
    %c0_i32_1 = arith.constant 0 : i32
    return %c0_i32, %c0_i32_0 : i32, i32
  }
  func.func @transform_5(%arg0: i32) -> (i32, i32) {
    %c0_i32 = arith.constant 0 : i32
    %c0_i32_0 = arith.constant 0 : i32
    %c0_i32_1 = arith.constant 0 : i32
    return %c0_i32, %c0_i32_0 : i32, i32
  }
  func.func @transform_6(%arg0: i32) -> (i32, i32) {
    %c0_i32 = arith.constant 0 : i32
    %c0_i32_0 = arith.constant 0 : i32
    %c0_i32_1 = arith.constant 0 : i32
    return %c0_i32, %c0_i32_0 : i32, i32
  }
  func.func @transform_7(%arg0: i32) -> (i32, i32) {
    %c0_i32 = arith.constant 0 : i32
    %c0_i32_0 = arith.constant 0 : i32
    %c0_i32_1 = arith.constant 0 : i32
    return %c0_i32, %c0_i32_0 : i32, i32
  }
  func.func @transform_8(%arg0: i32) -> (i32, i32) {
    %c0_i32 = arith.constant 0 : i32
    %c0_i32_0 = arith.constant 0 : i32
    %c0_i32_1 = arith.constant 0 : i32
    return %c0_i32, %c0_i32_0 : i32, i32
  }
  func.func @transform_9(%arg0: i32) -> (i32, i32) {
    %c0_i32 = arith.constant 0 : i32
    %c0_i32_0 = arith.constant 0 : i32
    %c0_i32_1 = arith.constant 0 : i32
    return %c0_i32, %c0_i32_0 : i32, i32
  }
  func.func @transform_10(%arg0: i32) -> (i32, i32) {
    %c0_i32 = arith.constant 0 : i32
    %c0_i32_0 = arith.constant 0 : i32
    %c0_i32_1 = arith.constant 0 : i32
    return %c0_i32, %c0_i32_0 : i32, i32
  }
  func.func @transform_11(%arg0: i32) -> (i32, i32) {
    %c0_i32 = arith.constant 0 : i32
    %c0_i32_0 = arith.constant 0 : i32
    return %c0_i32, %arg0 : i32, i32
  }
}

</mosaic_0001>

<llo_original>
// kernel: _pallas_forward.1
$region0: #{_pallas_forward.1}
  #allocation0 [shape = 'u32[]', space=smem, size = 0x4, offset = 0x4, fixed_abs, tag = 'smem constant byte address 0x4 - core index']
  #allocation1 [shape = 'u32[144,128]{1,0:T(1,128)}', space=vmem, size = 0x12000, scoped, tag = 'internal scratch']
  #allocation2 [shape = 'f32[1,1]{1,0:T(1,128)S(1)}', space=vmem, size = 0x200, scoped, tag = 'scoped memory for _pallas_forward.1']
  %s0 = inlined_call_operand.vmem [shape: f32[16,128], index: 0, kind: input, shape index: {}]
  %s1 = inlined_call_operand.vmem [shape: bf16[256,16], index: 1, kind: input, shape index: {}]
  %s2 = inlined_call_operand.vmem [shape: f32[256,1], index: 2, kind: input, shape index: {}]
  %s3 = inlined_call_operand.vmem [shape: bf16[256,256], index: 3, kind: input, shape index: {}]
  %s4 = inlined_call_operand.vmem [shape: f32[256,1], index: 4, kind: input, shape index: {}]
  %s5 = inlined_call_operand.vmem [shape: bf16[256,256], index: 5, kind: input, shape index: {}]
  %s6 = inlined_call_operand.vmem [shape: f32[256,1], index: 6, kind: input, shape index: {}]
  %s7 = inlined_call_operand.vmem [shape: bf16[256,256], index: 7, kind: input, shape index: {}]
  %s8 = inlined_call_operand.vmem [shape: f32[256,1], index: 8, kind: input, shape index: {}]
  %s9 = inlined_call_operand.vmem [shape: f32[256,1], index: 9, kind: input, shape index: {}]
  %s10 = inlined_call_operand.<no memory space> [shape: f32[1,1], index: 10, kind: input, shape index: {}]
  %s11 = inlined_call_operand.vmem [shape: f32[1,128], index: 11, kind: output, shape index: {}]
  %s12 = sld [smem:[#allocation0]]
  $region54: #{_pallas_forward.1} parent=0
    _
  %s14 = ssub.s32 1, %s12
  %s15 = scalar_select 0, %s14, %s12
  %v16 = vstv %s10
  %17 = vst [vmem:[#allocation2] sm:$0x1] %v16
  // Predicated region
  $region2: #{_pallas_forward.1} parent=0 // pred_check
    _
  $region3: #{_pallas_forward.1} parent=0 // pred_check_branch
    %19 = sbr.rel (0) target = $region5
  $region4: #{_pallas_forward.1} parent=0 // pred_region
    _
  $region5: #{_pallas_forward.1} parent=0 // pred_fallthru
    _
  // Predicated region
  $region6: #{_pallas_forward.1} parent=0 // pred_check
    _
  $region7: #{_pallas_forward.1} parent=0 // pred_check_branch
    %21 = sbr.rel (0) target = $region9
  $region8: #{_pallas_forward.1} parent=0 // pred_region
    _
  $region9: #{_pallas_forward.1} parent=0 // pred_fallthru
    _
  // Predicated region
  $region10: #{_pallas_forward.1} parent=0 // pred_check
    _
  $region11: #{_pallas_forward.1} parent=0 // pred_check_branch
    %23 = sbr.rel (0) target = $region13
  $region12: #{_pallas_forward.1} parent=0 // pred_region
    _
  $region13: #{_pallas_forward.1} parent=0 // pred_fallthru
    _
  // Predicated region
  $region14: #{_pallas_forward.1} parent=0 // pred_check
    _
  $region15: #{_pallas_forward.1} parent=0 // pred_check_branch
    %25 = sbr.rel (0) target = $region17
  $region16: #{_pallas_forward.1} parent=0 // pred_region
    _
  $region17: #{_pallas_forward.1} parent=0 // pred_fallthru
    _
  // Predicated region
  $region18: #{_pallas_forward.1} parent=0 // pred_check
    _
  $region19: #{_pallas_forward.1} parent=0 // pred_check_branch
    %27 = sbr.rel (0) target = $region21
  $region20: #{_pallas_forward.1} parent=0 // pred_region
    _
  $region21: #{_pallas_forward.1} parent=0 // pred_fallthru
    _
  // Predicated region
  $region22: #{_pallas_forward.1} parent=0 // pred_check
    _
  $region23: #{_pallas_forward.1} parent=0 // pred_check_branch
    %29 = sbr.rel (0) target = $region25
  $region24: #{_pallas_forward.1} parent=0 // pred_region
    _
  $region25: #{_pallas_forward.1} parent=0 // pred_fallthru
    _
  // Predicated region
  $region26: #{_pallas_forward.1} parent=0 // pred_check
    _
  $region27: #{_pallas_forward.1} parent=0 // pred_check_branch
    %31 = sbr.rel (0) target = $region29
  $region28: #{_pallas_forward.1} parent=0 // pred_region
    _
  $region29: #{_pallas_forward.1} parent=0 // pred_fallthru
    _
  // Predicated region
  $region30: #{_pallas_forward.1} parent=0 // pred_check
    _
  $region31: #{_pallas_forward.1} parent=0 // pred_check_branch
    %33 = sbr.rel (0) target = $region33
  $region32: #{_pallas_forward.1} parent=0 // pred_region
    _
  $region33: #{_pallas_forward.1} parent=0 // pred_fallthru
    _
  // Predicated region
  $region34: #{_pallas_forward.1} parent=0 // pred_check
    _
  $region35: #{_pallas_forward.1} parent=0 // pred_check_branch
    %35 = sbr.rel (0) target = $region37
  $region36: #{_pallas_forward.1} parent=0 // pred_region
    _
  $region37: #{_pallas_forward.1} parent=0 // pred_fallthru
    _
  // Predicated region
  $region38: #{_pallas_forward.1} parent=0 // pred_check
    _
  $region39: #{_pallas_forward.1} parent=0 // pred_check_branch
    %37 = sbr.rel (0) target = $region41
  $region40: #{_pallas_forward.1} parent=0 // pred_region
    _
  $region41: #{_pallas_forward.1} parent=0 // pred_fallthru
    _
  // Predicated region
  $region42: #{_pallas_forward.1} parent=0 // pred_check
    _
  $region43: #{_pallas_forward.1} parent=0 // pred_check_branch
    %39 = sbr.rel (0) target = $region45
  $region44: #{_pallas_forward.1} parent=0 // pred_region
    _
  $region45: #{_pallas_forward.1} parent=0 // pred_fallthru
    _
  %v41 = vld [vmem:[%s1] sm:$0xf]
  %v42 = vld [vmem:[%s1 + $0x4] sm:$0xf]
  %v43 = vld [vmem:[%s1 + $0x8] sm:$0xf]
  %v44 = vld [vmem:[%s1 + $0xc] sm:$0xf]
  %v45 = vld [vmem:[%s1 + $0x10] sm:$0xf]
  %v46 = vld [vmem:[%s1 + $0x14] sm:$0xf]
  %v47 = vld [vmem:[%s1 + $0x18] sm:$0xf]
  %v48 = vld [vmem:[%s1 + $0x1c] sm:$0xf]
  %v49 = vld [vmem:[%s1 + $0x20] sm:$0xf]
  %v50 = vld [vmem:[%s1 + $0x24] sm:$0xf]
  %v51 = vld [vmem:[%s1 + $0x28] sm:$0xf]
  %v52 = vld [vmem:[%s1 + $0x2c] sm:$0xf]
  %v53 = vld [vmem:[%s1 + $0x30] sm:$0xf]
  %v54 = vld [vmem:[%s1 + $0x34] sm:$0xf]
  %v55 = vld [vmem:[%s1 + $0x38] sm:$0xf]
  %v56 = vld [vmem:[%s1 + $0x3c] sm:$0xf]
  %v57 = vld [vmem:[%s1 + $0x40] sm:$0xf]
  %v58 = vld [vmem:[%s1 + $0x44] sm:$0xf]
  %v59 = vld [vmem:[%s1 + $0x48] sm:$0xf]
  %v60 = vld [vmem:[%s1 + $0x4c] sm:$0xf]
  %v61 = vld [vmem:[%s1 + $0x50] sm:$0xf]
  %v62 = vld [vmem:[%s1 + $0x54] sm:$0xf]
  %v63 = vld [vmem:[%s1 + $0x58] sm:$0xf]
  %v64 = vld [vmem:[%s1 + $0x5c] sm:$0xf]
  %v65 = vld [vmem:[%s1 + $0x60] sm:$0xf]
  %v66 = vld [vmem:[%s1 + $0x64] sm:$0xf]
  %v67 = vld [vmem:[%s1 + $0x68] sm:$0xf]
  %v68 = vld [vmem:[%s1 + $0x6c] sm:$0xf]
  %v69 = vld [vmem:[%s1 + $0x70] sm:$0xf]
  %v70 = vld [vmem:[%s1 + $0x74] sm:$0xf]
  %v71 = vld [vmem:[%s1 + $0x78] sm:$0xf]
  %v72 = vld [vmem:[%s1 + $0x7c] sm:$0xf]
  %v73 = vld [vmem:[%s0] sm:$0xff]
  %v74 = vld [vmem:[%s0 + $0x8] sm:$0xff]
  %v75 = vpack.c.bf16 %v74, %v73
  %v76 = vld [vmem:[%s2] sm:$0xff]
  %v77 = vld [vmem:[%s2 + $0x8] sm:$0xff]
  %v78 = vld [vmem:[%s2 + $0x10] sm:$0xff]
  %v79 = vld [vmem:[%s2 + $0x18] sm:$0xff]
  %v80 = vld [vmem:[%s2 + $0x20] sm:$0xff]
  %v81 = vld [vmem:[%s2 + $0x28] sm:$0xff]
  %v82 = vld [vmem:[%s2 + $0x30] sm:$0xff]
  %v83 = vld [vmem:[%s2 + $0x38] sm:$0xff]
  %v84 = vld [vmem:[%s2 + $0x40] sm:$0xff]
  %v85 = vld [vmem:[%s2 + $0x48] sm:$0xff]
  %v86 = vld [vmem:[%s2 + $0x50] sm:$0xff]
  %v87 = vld [vmem:[%s2 + $0x58] sm:$0xff]
  %v88 = vld [vmem:[%s2 + $0x60] sm:$0xff]
  %v89 = vld [vmem:[%s2 + $0x68] sm:$0xff]
  %v90 = vld [vmem:[%s2 + $0x70] sm:$0xff]
  %v91 = vld [vmem:[%s2 + $0x78] sm:$0xff]
  %v92 = vld [vmem:[%s2 + $0x80] sm:$0xff]
  %v93 = vld [vmem:[%s2 + $0x88] sm:$0xff]
  %v94 = vld [vmem:[%s2 + $0x90] sm:$0xff]
  %v95 = vld [vmem:[%s2 + $0x98] sm:$0xff]
  %v96 = vld [vmem:[%s2 + $0xa0] sm:$0xff]
  %v97 = vld [vmem:[%s2 + $0xa8] sm:$0xff]
  %v98 = vld [vmem:[%s2 + $0xb0] sm:$0xff]
  %v99 = vld [vmem:[%s2 + $0xb8] sm:$0xff]
  %v100 = vld [vmem:[%s2 + $0xc0] sm:$0xff]
  %v101 = vld [vmem:[%s2 + $0xc8] sm:$0xff]
  %v102 = vld [vmem:[%s2 + $0xd0] sm:$0xff]
  %v103 = vld [vmem:[%s2 + $0xd8] sm:$0xff]
  %v104 = vld [vmem:[%s2 + $0xe0] sm:$0xff]
  %v105 = vld [vmem:[%s2 + $0xe8] sm:$0xff]
  %v106 = vld [vmem:[%s2 + $0xf0] sm:$0xff]
  %v107 = vld [vmem:[%s2 + $0xf8] sm:$0xff]
  %109 = vset.pattern.permute.xlu0 0
  %110 = vperm.xlu0 %109, %v76
  %v111 = vpop.permute.xlu0 %110
  %114 = vset.pattern.permute.xlu0 0
  %115 = vperm.xlu0 %114, %v77
  %v116 = vpop.permute.xlu0 %115
  %119 = vset.pattern.permute.xlu0 0
  %120 = vperm.xlu0 %119, %v78
  %v121 = vpop.permute.xlu0 %120
  %124 = vset.pattern.permute.xlu0 0
  %125 = vperm.xlu0 %124, %v79
  %v126 = vpop.permute.xlu0 %125
  %129 = vset.pattern.permute.xlu0 0
  %130 = vperm.xlu0 %129, %v80
  %v131 = vpop.permute.xlu0 %130
  %134 = vset.pattern.permute.xlu0 0
  %135 = vperm.xlu0 %134, %v81
  %v136 = vpop.permute.xlu0 %135
  %139 = vset.pattern.permute.xlu0 0
  %140 = vperm.xlu0 %139, %v82
  %v141 = vpop.permute.xlu0 %140
  %144 = vset.pattern.permute.xlu0 0
  %145 = vperm.xlu0 %144, %v83
  %v146 = vpop.permute.xlu0 %145
  %149 = vset.pattern.permute.xlu0 0
  %150 = vperm.xlu0 %149, %v84
  %v151 = vpop.permute.xlu0 %150
  %154 = vset.pattern.permute.xlu0 0
  %155 = vperm.xlu0 %154, %v85
  %v156 = vpop.permute.xlu0 %155
  %159 = vset.pattern.permute.xlu0 0
  %160 = vperm.xlu0 %159, %v86
  %v161 = vpop.permute.xlu0 %160
  %164 = vset.pattern.permute.xlu0 0
  %165 = vperm.xlu0 %164, %v87
  %v166 = vpop.permute.xlu0 %165
  %169 = vset.pattern.permute.xlu0 0
  %170 = vperm.xlu0 %169, %v88
  %v171 = vpop.permute.xlu0 %170
  %174 = vset.pattern.permute.xlu0 0
  %175 = vperm.xlu0 %174, %v89
  %v176 = vpop.permute.xlu0 %175
  %179 = vset.pattern.permute.xlu0 0
  %180 = vperm.xlu0 %179, %v90
  %v181 = vpop.permute.xlu0 %180
  %184 = vset.pattern.permute.xlu0 0
  %185 = vperm.xlu0 %184, %v91
  %v186 = vpop.permute.xlu0 %185
  %189 = vset.pattern.permute.xlu0 0
  %190 = vperm.xlu0 %189, %v92
  %v191 = vpop.permute.xlu0 %190
  %194 = vset.pattern.permute.xlu0 0
  %195 = vperm.xlu0 %194, %v93
  %v196 = vpop.permute.xlu0 %195
  %199 = vset.pattern.permute.xlu0 0
  %200 = vperm.xlu0 %199, %v94
  %v201 = vpop.permute.xlu0 %200
  %204 = vset.pattern.permute.xlu0 0
  %205 = vperm.xlu0 %204, %v95
  %v206 = vpop.permute.xlu0 %205
  %209 = vset.pattern.permute.xlu0 0
  %210 = vperm.xlu0 %209, %v96
  %v211 = vpop.permute.xlu0 %210
  %214 = vset.pattern.permute.xlu0 0
  %215 = vperm.xlu0 %214, %v97
  %v216 = vpop.permute.xlu0 %215
  %219 = vset.pattern.permute.xlu0 0
  %220 = vperm.xlu0 %219, %v98
  %v221 = vpop.permute.xlu0 %220
  %224 = vset.pattern.permute.xlu0 0
  %225 = vperm.xlu0 %224, %v99
  %v226 = vpop.permute.xlu0 %225
  %229 = vset.pattern.permute.xlu0 0
  %230 = vperm.xlu0 %229, %v100
  %v231 = vpop.permute.xlu0 %230
  %234 = vset.pattern.permute.xlu0 0
  %235 = vperm.xlu0 %234, %v101
  %v236 = vpop.permute.xlu0 %235
  %239 = vset.pattern.permute.xlu0 0
  %240 = vperm.xlu0 %239, %v102
  %v241 = vpop.permute.xlu0 %240
  %244 = vset.pattern.permute.xlu0 0
  %245 = vperm.xlu0 %244, %v103
  %v246 = vpop.permute.xlu0 %245
  %249 = vset.pattern.permute.xlu0 0
  %250 = vperm.xlu0 %249, %v104
  %v251 = vpop.permute.xlu0 %250
  %254 = vset.pattern.permute.xlu0 0
  %255 = vperm.xlu0 %254, %v105
  %v256 = vpop.permute.xlu0 %255
  %259 = vset.pattern.permute.xlu0 0
  %260 = vperm.xlu0 %259, %v106
  %v261 = vpop.permute.xlu0 %260
  %264 = vset.pattern.permute.xlu0 0
  %265 = vperm.xlu0 %264, %v107
  %v266 = vpop.permute.xlu0 %265
  %v300 = vunpack.c.l.b16 %v41
  %v301 = vunpack.c.l.b16 %v42
  %v302 = vunpack.c.l.b16 %v43
  %v303 = vunpack.c.l.b16 %v44
  %v304 = vunpack.c.l.b16 %v45
  %v305 = vunpack.c.l.b16 %v46
  %v306 = vunpack.c.l.b16 %v47
  %v307 = vunpack.c.l.b16 %v48
  %v308 = vunpack.c.l.b16 %v49
  %v309 = vunpack.c.l.b16 %v50
  %v310 = vunpack.c.l.b16 %v51
  %v311 = vunpack.c.l.b16 %v52
  %v312 = vunpack.c.l.b16 %v53
  %v313 = vunpack.c.l.b16 %v54
  %v314 = vunpack.c.l.b16 %v55
  %v315 = vunpack.c.l.b16 %v56
  %v316 = vunpack.c.l.b16 %v57
  %v317 = vunpack.c.l.b16 %v58
  %v318 = vunpack.c.l.b16 %v59
  %v319 = vunpack.c.l.b16 %v60
  %v320 = vunpack.c.l.b16 %v61
  %v321 = vunpack.c.l.b16 %v62
  %v322 = vunpack.c.l.b16 %v63
  %v323 = vunpack.c.l.b16 %v64
  %v324 = vunpack.c.l.b16 %v65
  %v325 = vunpack.c.l.b16 %v66
  %v326 = vunpack.c.l.b16 %v67
  %v327 = vunpack.c.l.b16 %v68
  %v328 = vunpack.c.l.b16 %v69
  %v329 = vunpack.c.l.b16 %v70
  %v330 = vunpack.c.l.b16 %v71
  %v331 = vunpack.c.l.b16 %v72
  %v332 = vpack.c.b16 %v301, %v300
  %v333 = vpack.c.b16 %v303, %v302
  %v334 = vpack.c.b16 %v305, %v304
  %v335 = vpack.c.b16 %v307, %v306
  %v336 = vpack.c.b16 %v309, %v308
  %v337 = vpack.c.b16 %v311, %v310
  %v338 = vpack.c.b16 %v313, %v312
  %v339 = vpack.c.b16 %v315, %v314
  %v340 = vpack.c.b16 %v317, %v316
  %v341 = vpack.c.b16 %v319, %v318
  %v342 = vpack.c.b16 %v321, %v320
  %v343 = vpack.c.b16 %v323, %v322
  %v344 = vpack.c.b16 %v325, %v324
  %v345 = vpack.c.b16 %v327, %v326
  %v346 = vpack.c.b16 %v329, %v328
  %v347 = vpack.c.b16 %v331, %v330
  %vm348 = vcmask 130048
  %v350 = vsel %vm348, %v332, 0
  %v353 = vsel %vm348, %v333, 0
  %v356 = vsel %vm348, %v334, 0
  %v359 = vsel %vm348, %v335, 0
  %v362 = vsel %vm348, %v336, 0
  %v365 = vsel %vm348, %v337, 0
  %v368 = vsel %vm348, %v338, 0
  %v371 = vsel %vm348, %v339, 0
  %v374 = vsel %vm348, %v340, 0
  %v377 = vsel %vm348, %v341, 0
  %v380 = vsel %vm348, %v342, 0
  %v383 = vsel %vm348, %v343, 0
  %v386 = vsel %vm348, %v344, 0
  %v389 = vsel %vm348, %v345, 0
  %v392 = vsel %vm348, %v346, 0
  %v395 = vsel %vm348, %v347, 0
  %397 = vmatprep.subr.bf16.mxu0 0
  %398 = vmatpush1.bf16.msra.mxu0 0
  %399 = vmatprep.subr.bf16.mxu0 0
  %400 = vmatpush1.bf16.msra.mxu0 0
  %401 = vmatprep.subr.bf16.mxu0 0
  %402 = vmatpush1.bf16.msra.mxu0 0
  %403 = vmatprep.subr.bf16.mxu0 0
  %404 = vmatpush1.bf16.msra.mxu0 0
  %405 = vmatprep.subr.bf16.mxu0 0
  %406 = vmatpush1.bf16.msra.mxu0 0
  %407 = vmatprep.subr.bf16.mxu0 0
  %408 = vmatpush1.bf16.msra.mxu0 0
  %409 = vmatprep.subr.bf16.mxu0 0
  %410 = vmatpush1.bf16.msra.mxu0 0
  %411 = vmatprep.subr.bf16.mxu0 0
  %412 = vmatpush1.bf16.msra.mxu0 %v75
  %413 = vmatprep.subr.bf16.mxu0 0
  %414 = vmatpush2.bf16.msra.mxu0 0
  %415 = vmatprep.subr.bf16.mxu0 0
  %416 = vmatpush2.bf16.msra.mxu0 0
  %417 = vmatprep.subr.bf16.mxu0 0
  %418 = vmatpush2.bf16.msra.mxu0 0
  %419 = vmatprep.subr.bf16.mxu0 0
  %420 = vmatpush2.bf16.msra.mxu0 0
  %421 = vmatprep.subr.bf16.mxu0 0
  %422 = vmatpush2.bf16.msra.mxu0 0
  %423 = vmatprep.subr.bf16.mxu0 0
  %424 = vmatpush2.bf16.msra.mxu0 0
  %425 = vmatprep.subr.bf16.mxu0 0
  %426 = vmatpush2.bf16.msra.mxu0 0
  %427 = vmatprep.subr.bf16.mxu0 0
  %428 = vmatpush2.bf16.msra.mxu0 0
  %429 = vmatprep.mubr.bf16.mxu0 0
  %430 = vmatmul.mubr.bf16.gmra.mxu0 %v350
  %v431 = vpop.f32.mrf.mxu0
  %v432 = vadd.f32 %v111, %v431
  %v433 = vpop.f32.mrf.mxu0
  %v434 = vpop.f32.mrf.mxu0
  %v435 = vadd.f32 %v116, %v434
  %v436 = vpop.f32.mrf.mxu0
  %437 = vmatprep.mubr.bf16.mxu0 0
  %438 = vmatmul.mubr.bf16.gmra.mxu0 %v353
  %v439 = vpop.f32.mrf.mxu0
  %v440 = vadd.f32 %v121, %v439
  %v441 = vpop.f32.mrf.mxu0
  %v442 = vpop.f32.mrf.mxu0
  %v443 = vadd.f32 %v126, %v442
  %v444 = vpop.f32.mrf.mxu0
  %445 = vmatprep.mubr.bf16.mxu0 0
  %446 = vmatmul.mubr.bf16.gmra.mxu0 %v356
  %v447 = vpop.f32.mrf.mxu0
  %v448 = vadd.f32 %v131, %v447
  %v449 = vpop.f32.mrf.mxu0
  %v450 = vpop.f32.mrf.mxu0
  %v451 = vadd.f32 %v136, %v450
  %v452 = vpop.f32.mrf.mxu0
  %453 = vmatprep.mubr.bf16.mxu0 0
  %454 = vmatmul.mubr.bf16.gmra.mxu0 %v359
  %v455 = vpop.f32.mrf.mxu0
  %v456 = vadd.f32 %v141, %v455
  %v457 = vpop.f32.mrf.mxu0
  %v458 = vpop.f32.mrf.mxu0
  %v459 = vadd.f32 %v146, %v458
  %v460 = vpop.f32.mrf.mxu0
  %461 = vmatprep.mubr.bf16.mxu0 0
  %462 = vmatmul.mubr.bf16.gmra.mxu0 %v362
  %v463 = vpop.f32.mrf.mxu0
  %v464 = vadd.f32 %v151, %v463
  %v465 = vpop.f32.mrf.mxu0
  %v466 = vpop.f32.mrf.mxu0
  %v467 = vadd.f32 %v156, %v466
  %v468 = vpop.f32.mrf.mxu0
  %469 = vmatprep.mubr.bf16.mxu0 0
  %470 = vmatmul.mubr.bf16.gmra.mxu0 %v365
  %v471 = vpop.f32.mrf.mxu0
  %v472 = vadd.f32 %v161, %v471
  %v473 = vpop.f32.mrf.mxu0
  %v474 = vpop.f32.mrf.mxu0
  %v475 = vadd.f32 %v166, %v474
  %v476 = vpop.f32.mrf.mxu0
  %477 = vmatprep.mubr.bf16.mxu0 0
  %478 = vmatmul.mubr.bf16.gmra.mxu0 %v368
  %v479 = vpop.f32.mrf.mxu0
  %v480 = vadd.f32 %v171, %v479
  %v481 = vpop.f32.mrf.mxu0
  %v482 = vpop.f32.mrf.mxu0
  %v483 = vadd.f32 %v176, %v482
  %v484 = vpop.f32.mrf.mxu0
  %485 = vmatprep.mubr.bf16.mxu0 0
  %486 = vmatmul.mubr.bf16.gmra.mxu0 %v371
  %v487 = vpop.f32.mrf.mxu0
  %v488 = vadd.f32 %v181, %v487
  %v489 = vpop.f32.mrf.mxu0
  %v490 = vpop.f32.mrf.mxu0
  %v491 = vadd.f32 %v186, %v490
  %v492 = vpop.f32.mrf.mxu0
  %493 = vmatprep.mubr.bf16.mxu0 0
  %494 = vmatmul.mubr.bf16.gmra.mxu0 %v374
  %v495 = vpop.f32.mrf.mxu0
  %v496 = vadd.f32 %v191, %v495
  %v497 = vpop.f32.mrf.mxu0
  %v498 = vpop.f32.mrf.mxu0
  %v499 = vadd.f32 %v196, %v498
  %v500 = vpop.f32.mrf.mxu0
  %501 = vmatprep.mubr.bf16.mxu0 0
  %502 = vmatmul.mubr.bf16.gmra.mxu0 %v377
  %v503 = vpop.f32.mrf.mxu0
  %v504 = vadd.f32 %v201, %v503
  %v505 = vpop.f32.mrf.mxu0
  %v506 = vpop.f32.mrf.mxu0
  %v507 = vadd.f32 %v206, %v506
  %v508 = vpop.f32.mrf.mxu0
  %509 = vmatprep.mubr.bf16.mxu0 0
  %510 = vmatmul.mubr.bf16.gmra.mxu0 %v380
  %v511 = vpop.f32.mrf.mxu0
  %v512 = vadd.f32 %v211, %v511
  %v513 = vpop.f32.mrf.mxu0
  %v514 = vpop.f32.mrf.mxu0
  %v515 = vadd.f32 %v216, %v514
  %v516 = vpop.f32.mrf.mxu0
  %517 = vmatprep.mubr.bf16.mxu0 0
  %518 = vmatmul.mubr.bf16.gmra.mxu0 %v383
  %v519 = vpop.f32.mrf.mxu0
  %v520 = vadd.f32 %v221, %v519
  %v521 = vpop.f32.mrf.mxu0
  %v522 = vpop.f32.mrf.mxu0
  %v523 = vadd.f32 %v226, %v522
  %v524 = vpop.f32.mrf.mxu0
  %525 = vmatprep.mubr.bf16.mxu0 0
  %526 = vmatmul.mubr.bf16.gmra.mxu0 %v386
  %v527 = vpop.f32.mrf.mxu0
  %v528 = vadd.f32 %v231, %v527
  %v529 = vpop.f32.mrf.mxu0
  %v530 = vpop.f32.mrf.mxu0
  %v531 = vadd.f32 %v236, %v530
  %v532 = vpop.f32.mrf.mxu0
  %533 = vmatprep.mubr.bf16.mxu0 0
  %534 = vmatmul.mubr.bf16.gmra.mxu0 %v389
  %v535 = vpop.f32.mrf.mxu0
  %v536 = vadd.f32 %v241, %v535
  %v537 = vpop.f32.mrf.mxu0
  %v538 = vpop.f32.mrf.mxu0
  %v539 = vadd.f32 %v246, %v538
  %v540 = vpop.f32.mrf.mxu0
  %541 = vmatprep.mubr.bf16.mxu0 0
  %542 = vmatmul.mubr.bf16.gmra.mxu0 %v392
  %v543 = vpop.f32.mrf.mxu0
  %v544 = vadd.f32 %v251, %v543
  %v545 = vpop.f32.mrf.mxu0
  %v546 = vpop.f32.mrf.mxu0
  %v547 = vadd.f32 %v256, %v546
  %v548 = vpop.f32.mrf.mxu0
  %549 = vmatprep.mubr.bf16.mxu0 0
  %550 = vmatmul.mubr.bf16.gmra.mxu0 %v395
  %v551 = vpop.f32.mrf.mxu0
  %v552 = vadd.f32 %v261, %v551
  %v553 = vpop.f32.mrf.mxu0
  %v554 = vpop.f32.mrf.mxu0
  %v555 = vadd.f32 %v266, %v554
  %v556 = vpop.f32.mrf.mxu0
  %557 = vdwg.mxu0
  %v558 = vmax.f32 %v432, 0.0
  %v559 = vmax.f32 %v435, 0.0
  %v560 = vmax.f32 %v440, 0.0
  %v561 = vmax.f32 %v443, 0.0
  %v562 = vmax.f32 %v448, 0.0
  %v563 = vmax.f32 %v451, 0.0
  %v564 = vmax.f32 %v456, 0.0
  %v565 = vmax.f32 %v459, 0.0
  %v566 = vmax.f32 %v464, 0.0
  %v567 = vmax.f32 %v467, 0.0
  %v568 = vmax.f32 %v472, 0.0
  %v569 = vmax.f32 %v475, 0.0
  %v570 = vmax.f32 %v480, 0.0
  %v571 = vmax.f32 %v483, 0.0
  %v572 = vmax.f32 %v488, 0.0
  %v573 = vmax.f32 %v491, 0.0
  %v574 = vmax.f32 %v496, 0.0
  %v575 = vmax.f32 %v499, 0.0
  %v576 = vmax.f32 %v504, 0.0
  %v577 = vmax.f32 %v507, 0.0
  %v578 = vmax.f32 %v512, 0.0
  %v579 = vmax.f32 %v515, 0.0
  %v580 = vmax.f32 %v520, 0.0
  %v581 = vmax.f32 %v523, 0.0
  %v582 = vmax.f32 %v528, 0.0
  %v583 = vmax.f32 %v531, 0.0
  %v584 = vmax.f32 %v536, 0.0
  %v585 = vmax.f32 %v539, 0.0
  %v586 = vmax.f32 %v544, 0.0
  %v587 = vmax.f32 %v547, 0.0
  %v588 = vmax.f32 %v552, 0.0
  %v589 = vmax.f32 %v555, 0.0
  %v590 = vld [vmem:[%s3] sm:$0xff]
  %v591 = vld [vmem:[%s3 + $0x8] sm:$0xff]
  %v592 = vld [vmem:[%s3 + $0x10] sm:$0xff]
  %v593 = vld [vmem:[%s3 + $0x18] sm:$0xff]
  %v594 = vld [vmem:[%s3 + $0x20] sm:$0xff]
  %v595 = vld [vmem:[%s3 + $0x28] sm:$0xff]
  %v596 = vld [vmem:[%s3 + $0x30] sm:$0xff]
  %v597 = vld [vmem:[%s3 + $0x38] sm:$0xff]
  %v598 = vld [vmem:[%s3 + $0x40] sm:$0xff]
  %v599 = vld [vmem:[%s3 + $0x48] sm:$0xff]
  %v600 = vld [vmem:[%s3 + $0x50] sm:$0xff]
  %v601 = vld [vmem:[%s3 + $0x58] sm:$0xff]
  %v602 = vld [vmem:[%s3 + $0x60] sm:$0xff]
  %v603 = vld [vmem:[%s3 + $0x68] sm:$0xff]
  %v604 = vld [vmem:[%s3 + $0x70] sm:$0xff]
  %v605 = vld [vmem:[%s3 + $0x78] sm:$0xff]
  %v606 = vld [vmem:[%s3 + $0x80] sm:$0xff]
  %v607 = vld [vmem:[%s3 + $0x88] sm:$0xff]
  %v608 = vld [vmem:[%s3 + $0x90] sm:$0xff]
  %v609 = vld [vmem:[%s3 + $0x98] sm:$0xff]
  %v610 = vld [vmem:[%s3 + $0xa0] sm:$0xff]
  %v611 = vld [vmem:[%s3 + $0xa8] sm:$0xff]
  %v612 = vld [vmem:[%s3 + $0xb0] sm:$0xff]
  %v613 = vld [vmem:[%s3 + $0xb8] sm:$0xff]
  %v614 = vld [vmem:[%s3 + $0xc0] sm:$0xff]
  %v615 = vld [vmem:[%s3 + $0xc8] sm:$0xff]
  %v616 = vld [vmem:[%s3 + $0xd0] sm:$0xff]
  %v617 = vld [vmem:[%s3 + $0xd8] sm:$0xff]
  %v618 = vld [vmem:[%s3 + $0xe0] sm:$0xff]
  %v619 = vld [vmem:[%s3 + $0xe8] sm:$0xff]
  %v620 = vld [vmem:[%s3 + $0xf0] sm:$0xff]
  %v621 = vld [vmem:[%s3 + $0xf8] sm:$0xff]
  %v622 = vpack.c.bf16 %v559, %v558
  %v623 = vpack.c.bf16 %v561, %v560
  %v624 = vpack.c.bf16 %v563, %v562
  %v625 = vpack.c.bf16 %v565, %v564
  %v626 = vpack.c.bf16 %v567, %v566
  %v627 = vpack.c.bf16 %v569, %v568
  %v628 = vpack.c.bf16 %v571, %v570
  %v629 = vpack.c.bf16 %v573, %v572
  %v630 = vpack.c.bf16 %v575, %v574
  %v631 = vpack.c.bf16 %v577, %v576
  %v632 = vpack.c.bf16 %v579, %v578
  %v633 = vpack.c.bf16 %v581, %v580
  %v634 = vpack.c.bf16 %v583, %v582
  %v635 = vpack.c.bf16 %v585, %v584
  %v636 = vpack.c.bf16 %v587, %v586
  %v637 = vpack.c.bf16 %v589, %v588
  %v638 = vld [vmem:[%s4] sm:$0xff]
  %v639 = vld [vmem:[%s4 + $0x8] sm:$0xff]
  %v640 = vld [vmem:[%s4 + $0x10] sm:$0xff]
  %v641 = vld [vmem:[%s4 + $0x18] sm:$0xff]
  %v642 = vld [vmem:[%s4 + $0x20] sm:$0xff]
  %v643 = vld [vmem:[%s4 + $0x28] sm:$0xff]
  %v644 = vld [vmem:[%s4 + $0x30] sm:$0xff]
  %v645 = vld [vmem:[%s4 + $0x38] sm:$0xff]
  %v646 = vld [vmem:[%s4 + $0x40] sm:$0xff]
  %v647 = vld [vmem:[%s4 + $0x48] sm:$0xff]
  %v648 = vld [vmem:[%s4 + $0x50] sm:$0xff]
  %v649 = vld [vmem:[%s4 + $0x58] sm:$0xff]
  %v650 = vld [vmem:[%s4 + $0x60] sm:$0xff]
  %v651 = vld [vmem:[%s4 + $0x68] sm:$0xff]
  %v652 = vld [vmem:[%s4 + $0x70] sm:$0xff]
  %v653 = vld [vmem:[%s4 + $0x78] sm:$0xff]
  %v654 = vld [vmem:[%s4 + $0x80] sm:$0xff]
  %v655 = vld [vmem:[%s4 + $0x88] sm:$0xff]
  %v656 = vld [vmem:[%s4 + $0x90] sm:$0xff]
  %v657 = vld [vmem:[%s4 + $0x98] sm:$0xff]
  %v658 = vld [vmem:[%s4 + $0xa0] sm:$0xff]
  %v659 = vld [vmem:[%s4 + $0xa8] sm:$0xff]
  %v660 = vld [vmem:[%s4 + $0xb0] sm:$0xff]
  %v661 = vld [vmem:[%s4 + $0xb8] sm:$0xff]
  %v662 = vld [vmem:[%s4 + $0xc0] sm:$0xff]
  %v663 = vld [vmem:[%s4 + $0xc8] sm:$0xff]
  %v664 = vld [vmem:[%s4 + $0xd0] sm:$0xff]
  %v665 = vld [vmem:[%s4 + $0xd8] sm:$0xff]
  %v666 = vld [vmem:[%s4 + $0xe0] sm:$0xff]
  %v667 = vld [vmem:[%s4 + $0xe8] sm:$0xff]
  %v668 = vld [vmem:[%s4 + $0xf0] sm:$0xff]
  %v669 = vld [vmem:[%s4 + $0xf8] sm:$0xff]
  %671 = vset.pattern.permute.xlu0 0
  %672 = vperm.xlu0 %671, %v638
  %v673 = vpop.permute.xlu0 %672
  %676 = vset.pattern.permute.xlu0 0
  %677 = vperm.xlu0 %676, %v639
  %v678 = vpop.permute.xlu0 %677
  %681 = vset.pattern.permute.xlu0 0
  %682 = vperm.xlu0 %681, %v640
  %v683 = vpop.permute.xlu0 %682
  %686 = vset.pattern.permute.xlu0 0
  %687 = vperm.xlu0 %686, %v641
  %v688 = vpop.permute.xlu0 %687
  %691 = vset.pattern.permute.xlu0 0
  %692 = vperm.xlu0 %691, %v642
  %v693 = vpop.permute.xlu0 %692
  %696 = vset.pattern.permute.xlu0 0
  %697 = vperm.xlu0 %696, %v643
  %v698 = vpop.permute.xlu0 %697
  %701 = vset.pattern.permute.xlu0 0
  %702 = vperm.xlu0 %701, %v644
  %v703 = vpop.permute.xlu0 %702
  %706 = vset.pattern.permute.xlu0 0
  %707 = vperm.xlu0 %706, %v645
  %v708 = vpop.permute.xlu0 %707
  %711 = vset.pattern.permute.xlu0 0
  %712 = vperm.xlu0 %711, %v646
  %v713 = vpop.permute.xlu0 %712
  %716 = vset.pattern.permute.xlu0 0
  %717 = vperm.xlu0 %716, %v647
  %v718 = vpop.permute.xlu0 %717
  %721 = vset.pattern.permute.xlu0 0
  %722 = vperm.xlu0 %721, %v648
  %v723 = vpop.permute.xlu0 %722
  %726 = vset.pattern.permute.xlu0 0
  %727 = vperm.xlu0 %726, %v649
  %v728 = vpop.permute.xlu0 %727
  %731 = vset.pattern.permute.xlu0 0
  %732 = vperm.xlu0 %731, %v650
  %v733 = vpop.permute.xlu0 %732
  %736 = vset.pattern.permute.xlu0 0
  %737 = vperm.xlu0 %736, %v651
  %v738 = vpop.permute.xlu0 %737
  %741 = vset.pattern.permute.xlu0 0
  %742 = vperm.xlu0 %741, %v652
  %v743 = vpop.permute.xlu0 %742
  %746 = vset.pattern.permute.xlu0 0
  %747 = vperm.xlu0 %746, %v653
  %v748 = vpop.permute.xlu0 %747
  %751 = vset.pattern.permute.xlu0 0
  %752 = vperm.xlu0 %751, %v654
  %v753 = vpop.permute.xlu0 %752
  %756 = vset.pattern.permute.xlu0 0
  %757 = vperm.xlu0 %756, %v655
  %v758 = vpop.permute.xlu0 %757
  %761 = vset.pattern.permute.xlu0 0
  %762 = vperm.xlu0 %761, %v656
  %v763 = vpop.permute.xlu0 %762
  %766 = vset.pattern.permute.xlu0 0
  %767 = vperm.xlu0 %766, %v657
  %v768 = vpop.permute.xlu0 %767
  %771 = vset.pattern.permute.xlu0 0
  %772 = vperm.xlu0 %771, %v658
  %v773 = vpop.permute.xlu0 %772
  %776 = vset.pattern.permute.xlu0 0
  %777 = vperm.xlu0 %776, %v659
  %v778 = vpop.permute.xlu0 %777
  %781 = vset.pattern.permute.xlu0 0
  %782 = vperm.xlu0 %781, %v660
  %v783 = vpop.permute.xlu0 %782
  %786 = vset.pattern.permute.xlu0 0
  %787 = vperm.xlu0 %786, %v661
  %v788 = vpop.permute.xlu0 %787
  %791 = vset.pattern.permute.xlu0 0
  %792 = vperm.xlu0 %791, %v662
  %v793 = vpop.permute.xlu0 %792
  %796 = vset.pattern.permute.xlu0 0
  %797 = vperm.xlu0 %796, %v663
  %v798 = vpop.permute.xlu0 %797
  %801 = vset.pattern.permute.xlu0 0
  %802 = vperm.xlu0 %801, %v664
  %v803 = vpop.permute.xlu0 %802
  %806 = vset.pattern.permute.xlu0 0
  %807 = vperm.xlu0 %806, %v665
  %v808 = vpop.permute.xlu0 %807
  %811 = vset.pattern.permute.xlu0 0
  %812 = vperm.xlu0 %811, %v666
  %v813 = vpop.permute.xlu0 %812
  %816 = vset.pattern.permute.xlu0 0
  %817 = vperm.xlu0 %816, %v667
  %v818 = vpop.permute.xlu0 %817
  %821 = vset.pattern.permute.xlu0 0
  %822 = vperm.xlu0 %821, %v668
  %v823 = vpop.permute.xlu0 %822
  %826 = vset.pattern.permute.xlu0 0
  %827 = vperm.xlu0 %826, %v669
  %v828 = vpop.permute.xlu0 %827
  %v862 = vunpack.c.l.b16 %v590
  %v863 = vunpack.c.h.b16 %v590
  %v864 = vunpack.c.l.b16 %v591
  %v865 = vunpack.c.h.b16 %v591
  %v866 = vunpack.c.l.b16 %v592
  %v867 = vunpack.c.h.b16 %v592
  %v868 = vunpack.c.l.b16 %v593
  %v869 = vunpack.c.h.b16 %v593
  %v870 = vunpack.c.l.b16 %v594
  %v871 = vunpack.c.h.b16 %v594
  %v872 = vunpack.c.l.b16 %v595
  %v873 = vunpack.c.h.b16 %v595
  %v874 = vunpack.c.l.b16 %v596
  %v875 = vunpack.c.h.b16 %v596
  %v876 = vunpack.c.l.b16 %v597
  %v877 = vunpack.c.h.b16 %v597
  %v878 = vunpack.c.l.b16 %v598
  %v879 = vunpack.c.h.b16 %v598
  %v880 = vunpack.c.l.b16 %v599
  %v881 = vunpack.c.h.b16 %v599
  %v882 = vunpack.c.l.b16 %v600
  %v883 = vunpack.c.h.b16 %v600
  %v884 = vunpack.c.l.b16 %v601
  %v885 = vunpack.c.h.b16 %v601
  %v886 = vunpack.c.l.b16 %v602
  %v887 = vunpack.c.h.b16 %v602
  %v888 = vunpack.c.l.b16 %v603
  %v889 = vunpack.c.h.b16 %v603
  %v890 = vunpack.c.l.b16 %v604
  %v891 = vunpack.c.h.b16 %v604
  %v892 = vunpack.c.l.b16 %v605
  %v893 = vunpack.c.h.b16 %v605
  %v894 = vunpack.c.l.b16 %v606
  %v895 = vunpack.c.h.b16 %v606
  %v896 = vunpack.c.l.b16 %v607
  %v897 = vunpack.c.h.b16 %v607
  %v898 = vunpack.c.l.b16 %v608
  %v899 = vunpack.c.h.b16 %v608
  %v900 = vunpack.c.l.b16 %v609
  %v901 = vunpack.c.h.b16 %v609
  %v902 = vunpack.c.l.b16 %v610
  %v903 = vunpack.c.h.b16 %v610
  %v904 = vunpack.c.l.b16 %v611
  %v905 = vunpack.c.h.b16 %v611
  %v906 = vunpack.c.l.b16 %v612
  %v907 = vunpack.c.h.b16 %v612
  %v908 = vunpack.c.l.b16 %v613
  %v909 = vunpack.c.h.b16 %v613
  %v910 = vunpack.c.l.b16 %v614
  %v911 = vunpack.c.h.b16 %v614
  %v912 = vunpack.c.l.b16 %v615
  %v913 = vunpack.c.h.b16 %v615
  %v914 = vunpack.c.l.b16 %v616
  %v915 = vunpack.c.h.b16 %v616
  %v916 = vunpack.c.l.b16 %v617
  %v917 = vunpack.c.h.b16 %v617
  %v918 = vunpack.c.l.b16 %v618
  %v919 = vunpack.c.h.b16 %v618
  %v920 = vunpack.c.l.b16 %v619
  %v921 = vunpack.c.h.b16 %v619
  %v922 = vunpack.c.l.b16 %v620
  %v923 = vunpack.c.h.b16 %v620
  %v924 = vunpack.c.l.b16 %v621
  %v925 = vunpack.c.h.b16 %v621
  %v926 = vpack.c.b16 %v864, %v862
  %v927 = vpack.c.b16 %v865, %v863
  %v928 = vpack.c.b16 %v868, %v866
  %v929 = vpack.c.b16 %v869, %v867
  %v930 = vpack.c.b16 %v872, %v870
  %v931 = vpack.c.b16 %v873, %v871
  %v932 = vpack.c.b16 %v876, %v874
  %v933 = vpack.c.b16 %v877, %v875
  %v934 = vpack.c.b16 %v880, %v878
  %v935 = vpack.c.b16 %v881, %v879
  %v936 = vpack.c.b16 %v884, %v882
  %v937 = vpack.c.b16 %v885, %v883
  %v938 = vpack.c.b16 %v888, %v886
  %v939 = vpack.c.b16 %v889, %v887
  %v940 = vpack.c.b16 %v892, %v890
  %v941 = vpack.c.b16 %v893, %v891
  %v942 = vpack.c.b16 %v896, %v894
  %v943 = vpack.c.b16 %v897, %v895
  %v944 = vpack.c.b16 %v900, %v898
  %v945 = vpack.c.b16 %v901, %v899
  %v946 = vpack.c.b16 %v904, %v902
  %v947 = vpack.c.b16 %v905, %v903
  %v948 = vpack.c.b16 %v908, %v906
  %v949 = vpack.c.b16 %v909, %v907
  %v950 = vpack.c.b16 %v912, %v910
  %v951 = vpack.c.b16 %v913, %v911
  %v952 = vpack.c.b16 %v916, %v914
  %v953 = vpack.c.b16 %v917, %v915
  %v954 = vpack.c.b16 %v920, %v918
  %v955 = vpack.c.b16 %v921, %v919
  %v956 = vpack.c.b16 %v924, %v922
  %v957 = vpack.c.b16 %v925, %v923
  %990 = vmatprep.subr.bf16.mxu0 0
  %991 = vmatpush1.bf16.msra.mxu0 %v629
  %992 = vmatprep.subr.bf16.mxu0 0
  %993 = vmatpush1.bf16.msra.mxu0 %v628
  %994 = vmatprep.subr.bf16.mxu0 0
  %995 = vmatpush1.bf16.msra.mxu0 %v627
  %996 = vmatprep.subr.bf16.mxu0 0
  %997 = vmatpush1.bf16.msra.mxu0 %v626
  %998 = vmatprep.subr.bf16.mxu0 0
  %999 = vmatpush1.bf16.msra.mxu0 %v625
  %1000 = vmatprep.subr.bf16.mxu0 0
  %1001 = vmatpush1.bf16.msra.mxu0 %v624
  %1002 = vmatprep.subr.bf16.mxu0 0
  %1003 = vmatpush1.bf16.msra.mxu0 %v623
  %1004 = vmatprep.subr.bf16.mxu0 0
  %1005 = vmatpush1.bf16.msra.mxu0 %v622
  %1006 = vmatprep.subr.bf16.mxu0 0
  %1007 = vmatpush2.bf16.msra.mxu0 %v637
  %1008 = vmatprep.subr.bf16.mxu0 0
  %1009 = vmatpush2.bf16.msra.mxu0 %v636
  %1010 = vmatprep.subr.bf16.mxu0 0
  %1011 = vmatpush2.bf16.msra.mxu0 %v635
  %1012 = vmatprep.subr.bf16.mxu0 0
  %1013 = vmatpush2.bf16.msra.mxu0 %v634
  %1014 = vmatprep.subr.bf16.mxu0 0
  %1015 = vmatpush2.bf16.msra.mxu0 %v633
  %1016 = vmatprep.subr.bf16.mxu0 0
  %1017 = vmatpush2.bf16.msra.mxu0 %v632
  %1018 = vmatprep.subr.bf16.mxu0 0
  %1019 = vmatpush2.bf16.msra.mxu0 %v631
  %1020 = vmatprep.subr.bf16.mxu0 0
  %1021 = vmatpush2.bf16.msra.mxu0 %v630
  %1022 = vmatprep.mubr.bf16.mxu0 %v927
  %1023 = vmatmul.mubr.bf16.gmra.mxu0 %v926
  %v1024 = vpop.f32.mrf.mxu0
  %v1025 = vadd.f32 %v673, %v1024
  %v1026 = vpop.f32.mrf.mxu0
  %v1027 = vpop.f32.mrf.mxu0
  %v1028 = vadd.f32 %v678, %v1027
  %v1029 = vpop.f32.mrf.mxu0
  %1030 = vmatprep.mubr.bf16.mxu0 %v929
  %1031 = vmatmul.mubr.bf16.gmra.mxu0 %v928
  %v1032 = vpop.f32.mrf.mxu0
  %v1033 = vadd.f32 %v683, %v1032
  %v1034 = vpop.f32.mrf.mxu0
  %v1035 = vpop.f32.mrf.mxu0
  %v1036 = vadd.f32 %v688, %v1035
  %v1037 = vpop.f32.mrf.mxu0
  %1038 = vmatprep.mubr.bf16.mxu0 %v931
  %1039 = vmatmul.mubr.bf16.gmra.mxu0 %v930
  %v1040 = vpop.f32.mrf.mxu0
  %v1041 = vadd.f32 %v693, %v1040
  %v1042 = vpop.f32.mrf.mxu0
  %v1043 = vpop.f32.mrf.mxu0
  %v1044 = vadd.f32 %v698, %v1043
  %v1045 = vpop.f32.mrf.mxu0
  %1046 = vmatprep.mubr.bf16.mxu0 %v933
  %1047 = vmatmul.mubr.bf16.gmra.mxu0 %v932
  %v1048 = vpop.f32.mrf.mxu0
  %v1049 = vadd.f32 %v703, %v1048
  %v1050 = vpop.f32.mrf.mxu0
  %v1051 = vpop.f32.mrf.mxu0
  %v1052 = vadd.f32 %v708, %v1051
  %v1053 = vpop.f32.mrf.mxu0
  %1054 = vmatprep.mubr.bf16.mxu0 %v935
  %1055 = vmatmul.mubr.bf16.gmra.mxu0 %v934
  %v1056 = vpop.f32.mrf.mxu0
  %v1057 = vadd.f32 %v713, %v1056
  %v1058 = vpop.f32.mrf.mxu0
  %v1059 = vpop.f32.mrf.mxu0
  %v1060 = vadd.f32 %v718, %v1059
  %v1061 = vpop.f32.mrf.mxu0
  %1062 = vmatprep.mubr.bf16.mxu0 %v937
  %1063 = vmatmul.mubr.bf16.gmra.mxu0 %v936
  %v1064 = vpop.f32.mrf.mxu0
  %v1065 = vadd.f32 %v723, %v1064
  %v1066 = vpop.f32.mrf.mxu0
  %v1067 = vpop.f32.mrf.mxu0
  %v1068 = vadd.f32 %v728, %v1067
  %v1069 = vpop.f32.mrf.mxu0
  %1070 = vmatprep.mubr.bf16.mxu0 %v939
  %1071 = vmatmul.mubr.bf16.gmra.mxu0 %v938
  %v1072 = vpop.f32.mrf.mxu0
  %v1073 = vadd.f32 %v733, %v1072
  %v1074 = vpop.f32.mrf.mxu0
  %v1075 = vpop.f32.mrf.mxu0
  %v1076 = vadd.f32 %v738, %v1075
  %v1077 = vpop.f32.mrf.mxu0
  %1078 = vmatprep.mubr.bf16.mxu0 %v941
  %1079 = vmatmul.mubr.bf16.gmra.mxu0 %v940
  %v1080 = vpop.f32.mrf.mxu0
  %v1081 = vadd.f32 %v743, %v1080
  %v1082 = vpop.f32.mrf.mxu0
  %v1083 = vpop.f32.mrf.mxu0
  %v1084 = vadd.f32 %v748, %v1083
  %v1085 = vpop.f32.mrf.mxu0
  %1086 = vmatprep.mubr.bf16.mxu0 %v943
  %1087 = vmatmul.mubr.bf16.gmra.mxu0 %v942
  %v1088 = vpop.f32.mrf.mxu0
  %v1089 = vadd.f32 %v753, %v1088
  %v1090 = vpop.f32.mrf.mxu0
  %v1091 = vpop.f32.mrf.mxu0
  %v1092 = vadd.f32 %v758, %v1091
  %v1093 = vpop.f32.mrf.mxu0
  %1094 = vmatprep.mubr.bf16.mxu0 %v945
  %1095 = vmatmul.mubr.bf16.gmra.mxu0 %v944
  %v1096 = vpop.f32.mrf.mxu0
  %v1097 = vadd.f32 %v763, %v1096
  %v1098 = vpop.f32.mrf.mxu0
  %v1099 = vpop.f32.mrf.mxu0
  %v1100 = vadd.f32 %v768, %v1099
  %v1101 = vpop.f32.mrf.mxu0
  %1102 = vmatprep.mubr.bf16.mxu0 %v947
  %1103 = vmatmul.mubr.bf16.gmra.mxu0 %v946
  %v1104 = vpop.f32.mrf.mxu0
  %v1105 = vadd.f32 %v773, %v1104
  %v1106 = vpop.f32.mrf.mxu0
  %v1107 = vpop.f32.mrf.mxu0
  %v1108 = vadd.f32 %v778, %v1107
  %v1109 = vpop.f32.mrf.mxu0
  %1110 = vmatprep.mubr.bf16.mxu0 %v949
  %1111 = vmatmul.mubr.bf16.gmra.mxu0 %v948
  %v1112 = vpop.f32.mrf.mxu0
  %v1113 = vadd.f32 %v783, %v1112
  %v1114 = vpop.f32.mrf.mxu0
  %v1115 = vpop.f32.mrf.mxu0
  %v1116 = vadd.f32 %v788, %v1115
  %v1117 = vpop.f32.mrf.mxu0
  %1118 = vmatprep.mubr.bf16.mxu0 %v951
  %1119 = vmatmul.mubr.bf16.gmra.mxu0 %v950
  %v1120 = vpop.f32.mrf.mxu0
  %v1121 = vadd.f32 %v793, %v1120
  %v1122 = vpop.f32.mrf.mxu0
  %v1123 = vpop.f32.mrf.mxu0
  %v1124 = vadd.f32 %v798, %v1123
  %v1125 = vpop.f32.mrf.mxu0
  %1126 = vmatprep.mubr.bf16.mxu0 %v953
  %1127 = vmatmul.mubr.bf16.gmra.mxu0 %v952
  %v1128 = vpop.f32.mrf.mxu0
  %v1129 = vadd.f32 %v803, %v1128
  %v1130 = vpop.f32.mrf.mxu0
  %v1131 = vpop.f32.mrf.mxu0
  %v1132 = vadd.f32 %v808, %v1131
  %v1133 = vpop.f32.mrf.mxu0
  %1134 = vmatprep.mubr.bf16.mxu0 %v955
  %1135 = vmatmul.mubr.bf16.gmra.mxu0 %v954
  %v1136 = vpop.f32.mrf.mxu0
  %v1137 = vadd.f32 %v813, %v1136
  %v1138 = vpop.f32.mrf.mxu0
  %v1139 = vpop.f32.mrf.mxu0
  %v1140 = vadd.f32 %v818, %v1139
  %v1141 = vpop.f32.mrf.mxu0
  %1142 = vmatprep.mubr.bf16.mxu0 %v957
  %1143 = vmatmul.mubr.bf16.gmra.mxu0 %v956
  %v1144 = vpop.f32.mrf.mxu0
  %v1145 = vadd.f32 %v823, %v1144
  %v1146 = vpop.f32.mrf.mxu0
  %v1147 = vpop.f32.mrf.mxu0
  %v1148 = vadd.f32 %v828, %v1147
  %v1149 = vpop.f32.mrf.mxu0
  %1150 = vdwg.mxu0
  %v1151 = vmax.f32 %v1025, 0.0
  %v1152 = vmax.f32 %v1028, 0.0
  %v1153 = vmax.f32 %v1033, 0.0
  %v1154 = vmax.f32 %v1036, 0.0
  %v1155 = vmax.f32 %v1041, 0.0
  %v1156 = vmax.f32 %v1044, 0.0
  %v1157 = vmax.f32 %v1049, 0.0
  %v1158 = vmax.f32 %v1052, 0.0
  %v1159 = vmax.f32 %v1057, 0.0
  %v1160 = vmax.f32 %v1060, 0.0
  %v1161 = vmax.f32 %v1065, 0.0
  %v1162 = vmax.f32 %v1068, 0.0
  %v1163 = vmax.f32 %v1073, 0.0
  %v1164 = vmax.f32 %v1076, 0.0
  %v1165 = vmax.f32 %v1081, 0.0
  %v1166 = vmax.f32 %v1084, 0.0
  %v1167 = vmax.f32 %v1089, 0.0
  %v1168 = vmax.f32 %v1092, 0.0
  %v1169 = vmax.f32 %v1097, 0.0
  %v1170 = vmax.f32 %v1100, 0.0
  %v1171 = vmax.f32 %v1105, 0.0
  %v1172 = vmax.f32 %v1108, 0.0
  %v1173 = vmax.f32 %v1113, 0.0
  %v1174 = vmax.f32 %v1116, 0.0
  %v1175 = vmax.f32 %v1121, 0.0
  %v1176 = vmax.f32 %v1124, 0.0
  %v1177 = vmax.f32 %v1129, 0.0
  %v1178 = vmax.f32 %v1132, 0.0
  %v1179 = vmax.f32 %v1137, 0.0
  %v1180 = vmax.f32 %v1140, 0.0
  %v1181 = vmax.f32 %v1145, 0.0
  %v1182 = vmax.f32 %v1148, 0.0
  %v1183 = vld [vmem:[%s5] sm:$0xff]
  %v1184 = vld [vmem:[%s5 + $0x8] sm:$0xff]
  %v1185 = vld [vmem:[%s5 + $0x10] sm:$0xff]
  %v1186 = vld [vmem:[%s5 + $0x18] sm:$0xff]
  %v1187 = vld [vmem:[%s5 + $0x20] sm:$0xff]
  %v1188 = vld [vmem:[%s5 + $0x28] sm:$0xff]
  %v1189 = vld [vmem:[%s5 + $0x30] sm:$0xff]
  %v1190 = vld [vmem:[%s5 + $0x38] sm:$0xff]
  %v1191 = vld [vmem:[%s5 + $0x40] sm:$0xff]
  %v1192 = vld [vmem:[%s5 + $0x48] sm:$0xff]
  %v1193 = vld [vmem:[%s5 + $0x50] sm:$0xff]
  %v1194 = vld [vmem:[%s5 + $0x58] sm:$0xff]
  %v1195 = vld [vmem:[%s5 + $0x60] sm:$0xff]
  %v1196 = vld [vmem:[%s5 + $0x68] sm:$0xff]
  %v1197 = vld [vmem:[%s5 + $0x70] sm:$0xff]
  %v1198 = vld [vmem:[%s5 + $0x78] sm:$0xff]
  %v1199 = vld [vmem:[%s5 + $0x80] sm:$0xff]
  %v1200 = vld [vmem:[%s5 + $0x88] sm:$0xff]
  %v1201 = vld [vmem:[%s5 + $0x90] sm:$0xff]
  %v1202 = vld [vmem:[%s5 + $0x98] sm:$0xff]
  %v1203 = vld [vmem:[%s5 + $0xa0] sm:$0xff]
  %v1204 = vld [vmem:[%s5 + $0xa8] sm:$0xff]
  %v1205 = vld [vmem:[%s5 + $0xb0] sm:$0xff]
  %v1206 = vld [vmem:[%s5 + $0xb8] sm:$0xff]
  %v1207 = vld [vmem:[%s5 + $0xc0] sm:$0xff]
  %v1208 = vld [vmem:[%s5 + $0xc8] sm:$0xff]
  %v1209 = vld [vmem:[%s5 + $0xd0] sm:$0xff]
  %v1210 = vld [vmem:[%s5 + $0xd8] sm:$0xff]
  %v1211 = vld [vmem:[%s5 + $0xe0] sm:$0xff]
  %v1212 = vld [vmem:[%s5 + $0xe8] sm:$0xff]
  %v1213 = vld [vmem:[%s5 + $0xf0] sm:$0xff]
  %v1214 = vld [vmem:[%s5 + $0xf8] sm:$0xff]
  %v1215 = vpack.c.bf16 %v1152, %v1151
  %v1216 = vpack.c.bf16 %v1154, %v1153
  %v1217 = vpack.c.bf16 %v1156, %v1155
  %v1218 = vpack.c.bf16 %v1158, %v1157
  %v1219 = vpack.c.bf16 %v1160, %v1159
  %v1220 = vpack.c.bf16 %v1162, %v1161
  %v1221 = vpack.c.bf16 %v1164, %v1163
  %v1222 = vpack.c.bf16 %v1166, %v1165
  %v1223 = vpack.c.bf16 %v1168, %v1167
  %v1224 = vpack.c.bf16 %v1170, %v1169
  %v1225 = vpack.c.bf16 %v1172, %v1171
  %v1226 = vpack.c.bf16 %v1174, %v1173
  %v1227 = vpack.c.bf16 %v1176, %v1175
  %v1228 = vpack.c.bf16 %v1178, %v1177
  %v1229 = vpack.c.bf16 %v1180, %v1179
  %v1230 = vpack.c.bf16 %v1182, %v1181
  %v1231 = vld [vmem:[%s6] sm:$0xff]
  %v1232 = vld [vmem:[%s6 + $0x8] sm:$0xff]
  %v1233 = vld [vmem:[%s6 + $0x10] sm:$0xff]
  %v1234 = vld [vmem:[%s6 + $0x18] sm:$0xff]
  %v1235 = vld [vmem:[%s6 + $0x20] sm:$0xff]
  %v1236 = vld [vmem:[%s6 + $0x28] sm:$0xff]
  %v1237 = vld [vmem:[%s6 + $0x30] sm:$0xff]
  %v1238 = vld [vmem:[%s6 + $0x38] sm:$0xff]
  %v1239 = vld [vmem:[%s6 + $0x40] sm:$0xff]
  %v1240 = vld [vmem:[%s6 + $0x48] sm:$0xff]
  %v1241 = vld [vmem:[%s6 + $0x50] sm:$0xff]
  %v1242 = vld [vmem:[%s6 + $0x58] sm:$0xff]
  %v1243 = vld [vmem:[%s6 + $0x60] sm:$0xff]
  %v1244 = vld [vmem:[%s6 + $0x68] sm:$0xff]
  %v1245 = vld [vmem:[%s6 + $0x70] sm:$0xff]
  %v1246 = vld [vmem:[%s6 + $0x78] sm:$0xff]
  %v1247 = vld [vmem:[%s6 + $0x80] sm:$0xff]
  %v1248 = vld [vmem:[%s6 + $0x88] sm:$0xff]
  %v1249 = vld [vmem:[%s6 + $0x90] sm:$0xff]
  %v1250 = vld [vmem:[%s6 + $0x98] sm:$0xff]
  %v1251 = vld [vmem:[%s6 + $0xa0] sm:$0xff]
  %v1252 = vld [vmem:[%s6 + $0xa8] sm:$0xff]
  %v1253 = vld [vmem:[%s6 + $0xb0] sm:$0xff]
  %v1254 = vld [vmem:[%s6 + $0xb8] sm:$0xff]
  %v1255 = vld [vmem:[%s6 + $0xc0] sm:$0xff]
  %v1256 = vld [vmem:[%s6 + $0xc8] sm:$0xff]
  %v1257 = vld [vmem:[%s6 + $0xd0] sm:$0xff]
  %v1258 = vld [vmem:[%s6 + $0xd8] sm:$0xff]
  %v1259 = vld [vmem:[%s6 + $0xe0] sm:$0xff]
  %v1260 = vld [vmem:[%s6 + $0xe8] sm:$0xff]
  %v1261 = vld [vmem:[%s6 + $0xf0] sm:$0xff]
  %v1262 = vld [vmem:[%s6 + $0xf8] sm:$0xff]
  %1264 = vset.pattern.permute.xlu0 0
  %1265 = vperm.xlu0 %1264, %v1231
  %v1266 = vpop.permute.xlu0 %1265
  %1269 = vset.pattern.permute.xlu0 0
  %1270 = vperm.xlu0 %1269, %v1232
  %v1271 = vpop.permute.xlu0 %1270
  %1274 = vset.pattern.permute.xlu0 0
  %1275 = vperm.xlu0 %1274, %v1233
  %v1276 = vpop.permute.xlu0 %1275
  %1279 = vset.pattern.permute.xlu0 0
  %1280 = vperm.xlu0 %1279, %v1234
  %v1281 = vpop.permute.xlu0 %1280
  %1284 = vset.pattern.permute.xlu0 0
  %1285 = vperm.xlu0 %1284, %v1235
  %v1286 = vpop.permute.xlu0 %1285
  %1289 = vset.pattern.permute.xlu0 0
  %1290 = vperm.xlu0 %1289, %v1236
  %v1291 = vpop.permute.xlu0 %1290
  %1294 = vset.pattern.permute.xlu0 0
  %1295 = vperm.xlu0 %1294, %v1237
  %v1296 = vpop.permute.xlu0 %1295
  %1299 = vset.pattern.permute.xlu0 0
  %1300 = vperm.xlu0 %1299, %v1238
  %v1301 = vpop.permute.xlu0 %1300
  %1304 = vset.pattern.permute.xlu0 0
  %1305 = vperm.xlu0 %1304, %v1239
  %v1306 = vpop.permute.xlu0 %1305
  %1309 = vset.pattern.permute.xlu0 0
  %1310 = vperm.xlu0 %1309, %v1240
  %v1311 = vpop.permute.xlu0 %1310
  %1314 = vset.pattern.permute.xlu0 0
  %1315 = vperm.xlu0 %1314, %v1241
  %v1316 = vpop.permute.xlu0 %1315
  %1319 = vset.pattern.permute.xlu0 0
  %1320 = vperm.xlu0 %1319, %v1242
  %v1321 = vpop.permute.xlu0 %1320
  %1324 = vset.pattern.permute.xlu0 0
  %1325 = vperm.xlu0 %1324, %v1243
  %v1326 = vpop.permute.xlu0 %1325
  %1329 = vset.pattern.permute.xlu0 0
  %1330 = vperm.xlu0 %1329, %v1244
  %v1331 = vpop.permute.xlu0 %1330
  %1334 = vset.pattern.permute.xlu0 0
  %1335 = vperm.xlu0 %1334, %v1245
  %v1336 = vpop.permute.xlu0 %1335
  %1339 = vset.pattern.permute.xlu0 0
  %1340 = vperm.xlu0 %1339, %v1246
  %v1341 = vpop.permute.xlu0 %1340
  %1344 = vset.pattern.permute.xlu0 0
  %1345 = vperm.xlu0 %1344, %v1247
  %v1346 = vpop.permute.xlu0 %1345
  %1349 = vset.pattern.permute.xlu0 0
  %1350 = vperm.xlu0 %1349, %v1248
  %v1351 = vpop.permute.xlu0 %1350
  %1354 = vset.pattern.permute.xlu0 0
  %1355 = vperm.xlu0 %1354, %v1249
  %v1356 = vpop.permute.xlu0 %1355
  %1359 = vset.pattern.permute.xlu0 0
  %1360 = vperm.xlu0 %1359, %v1250
  %v1361 = vpop.permute.xlu0 %1360
  %1364 = vset.pattern.permute.xlu0 0
  %1365 = vperm.xlu0 %1364, %v1251
  %v1366 = vpop.permute.xlu0 %1365
  %1369 = vset.pattern.permute.xlu0 0
  %1370 = vperm.xlu0 %1369, %v1252
  %v1371 = vpop.permute.xlu0 %1370
  %1374 = vset.pattern.permute.xlu0 0
  %1375 = vperm.xlu0 %1374, %v1253
  %v1376 = vpop.permute.xlu0 %1375
  %1379 = vset.pattern.permute.xlu0 0
  %1380 = vperm.xlu0 %1379, %v1254
  %v1381 = vpop.permute.xlu0 %1380
  %1384 = vset.pattern.permute.xlu0 0
  %1385 = vperm.xlu0 %1384, %v1255
  %v1386 = vpop.permute.xlu0 %1385
  %1389 = vset.pattern.permute.xlu0 0
  %1390 = vperm.xlu0 %1389, %v1256
  %v1391 = vpop.permute.xlu0 %1390
  %1394 = vset.pattern.permute.xlu0 0
  %1395 = vperm.xlu0 %1394, %v1257
  %v1396 = vpop.permute.xlu0 %1395
  %1399 = vset.pattern.permute.xlu0 0
  %1400 = vperm.xlu0 %1399, %v1258
  %v1401 = vpop.permute.xlu0 %1400
  %1404 = vset.pattern.permute.xlu0 0
  %1405 = vperm.xlu0 %1404, %v1259
  %v1406 = vpop.permute.xlu0 %1405
  %1409 = vset.pattern.permute.xlu0 0
  %1410 = vperm.xlu0 %1409, %v1260
  %v1411 = vpop.permute.xlu0 %1410
  %1414 = vset.pattern.permute.xlu0 0
  %1415 = vperm.xlu0 %1414, %v1261
  %v1416 = vpop.permute.xlu0 %1415
  %1419 = vset.pattern.permute.xlu0 0
  %1420 = vperm.xlu0 %1419, %v1262
  %v1421 = vpop.permute.xlu0 %1420
  %v1455 = vunpack.c.l.b16 %v1183
  %v1456 = vunpack.c.h.b16 %v1183
  %v1457 = vunpack.c.l.b16 %v1184
  %v1458 = vunpack.c.h.b16 %v1184
  %v1459 = vunpack.c.l.b16 %v1185
  %v1460 = vunpack.c.h.b16 %v1185
  %v1461 = vunpack.c.l.b16 %v1186
  %v1462 = vunpack.c.h.b16 %v1186
  %v1463 = vunpack.c.l.b16 %v1187
  %v1464 = vunpack.c.h.b16 %v1187
  %v1465 = vunpack.c.l.b16 %v1188
  %v1466 = vunpack.c.h.b16 %v1188
  %v1467 = vunpack.c.l.b16 %v1189
  %v1468 = vunpack.c.h.b16 %v1189
  %v1469 = vunpack.c.l.b16 %v1190
  %v1470 = vunpack.c.h.b16 %v1190
  %v1471 = vunpack.c.l.b16 %v1191
  %v1472 = vunpack.c.h.b16 %v1191
  %v1473 = vunpack.c.l.b16 %v1192
  %v1474 = vunpack.c.h.b16 %v1192
  %v1475 = vunpack.c.l.b16 %v1193
  %v1476 = vunpack.c.h.b16 %v1193
  %v1477 = vunpack.c.l.b16 %v1194
  %v1478 = vunpack.c.h.b16 %v1194
  %v1479 = vunpack.c.l.b16 %v1195
  %v1480 = vunpack.c.h.b16 %v1195
  %v1481 = vunpack.c.l.b16 %v1196
  %v1482 = vunpack.c.h.b16 %v1196
  %v1483 = vunpack.c.l.b16 %v1197
  %v1484 = vunpack.c.h.b16 %v1197
  %v1485 = vunpack.c.l.b16 %v1198
  %v1486 = vunpack.c.h.b16 %v1198
  %v1487 = vunpack.c.l.b16 %v1199
  %v1488 = vunpack.c.h.b16 %v1199
  %v1489 = vunpack.c.l.b16 %v1200
  %v1490 = vunpack.c.h.b16 %v1200
  %v1491 = vunpack.c.l.b16 %v1201
  %v1492 = vunpack.c.h.b16 %v1201
  %v1493 = vunpack.c.l.b16 %v1202
  %v1494 = vunpack.c.h.b16 %v1202
  %v1495 = vunpack.c.l.b16 %v1203
  %v1496 = vunpack.c.h.b16 %v1203
  %v1497 = vunpack.c.l.b16 %v1204
  %v1498 = vunpack.c.h.b16 %v1204
  %v1499 = vunpack.c.l.b16 %v1205
  %v1500 = vunpack.c.h.b16 %v1205
  %v1501 = vunpack.c.l.b16 %v1206
  %v1502 = vunpack.c.h.b16 %v1206
  %v1503 = vunpack.c.l.b16 %v1207
  %v1504 = vunpack.c.h.b16 %v1207
  %v1505 = vunpack.c.l.b16 %v1208
  %v1506 = vunpack.c.h.b16 %v1208
  %v1507 = vunpack.c.l.b16 %v1209
  %v1508 = vunpack.c.h.b16 %v1209
  %v1509 = vunpack.c.l.b16 %v1210
  %v1510 = vunpack.c.h.b16 %v1210
  %v1511 = vunpack.c.l.b16 %v1211
  %v1512 = vunpack.c.h.b16 %v1211
  %v1513 = vunpack.c.l.b16 %v1212
  %v1514 = vunpack.c.h.b16 %v1212
  %v1515 = vunpack.c.l.b16 %v1213
  %v1516 = vunpack.c.h.b16 %v1213
  %v1517 = vunpack.c.l.b16 %v1214
  %v1518 = vunpack.c.h.b16 %v1214
  %v1519 = vpack.c.b16 %v1457, %v1455
  %v1520 = vpack.c.b16 %v1458, %v1456
  %v1521 = vpack.c.b16 %v1461, %v1459
  %v1522 = vpack.c.b16 %v1462, %v1460
  %v1523 = vpack.c.b16 %v1465, %v1463
  %v1524 = vpack.c.b16 %v1466, %v1464
  %v1525 = vpack.c.b16 %v1469, %v1467
  %v1526 = vpack.c.b16 %v1470, %v1468
  %v1527 = vpack.c.b16 %v1473, %v1471
  %v1528 = vpack.c.b16 %v1474, %v1472
  %v1529 = vpack.c.b16 %v1477, %v1475
  %v1530 = vpack.c.b16 %v1478, %v1476
  %v1531 = vpack.c.b16 %v1481, %v1479
  %v1532 = vpack.c.b16 %v1482, %v1480
  %v1533 = vpack.c.b16 %v1485, %v1483
  %v1534 = vpack.c.b16 %v1486, %v1484
  %v1535 = vpack.c.b16 %v1489, %v1487
  %v1536 = vpack.c.b16 %v1490, %v1488
  %v1537 = vpack.c.b16 %v1493, %v1491
  %v1538 = vpack.c.b16 %v1494, %v1492
  %v1539 = vpack.c.b16 %v1497, %v1495
  %v1540 = vpack.c.b16 %v1498, %v1496
  %v1541 = vpack.c.b16 %v1501, %v1499
  %v1542 = vpack.c.b16 %v1502, %v1500
  %v1543 = vpack.c.b16 %v1505, %v1503
  %v1544 = vpack.c.b16 %v1506, %v1504
  %v1545 = vpack.c.b16 %v1509, %v1507
  %v1546 = vpack.c.b16 %v1510, %v1508
  %v1547 = vpack.c.b16 %v1513, %v1511
  %v1548 = vpack.c.b16 %v1514, %v1512
  %v1549 = vpack.c.b16 %v1517, %v1515
  %v1550 = vpack.c.b16 %v1518, %v1516
  %1583 = vmatprep.subr.bf16.mxu0 0
  %1584 = vmatpush1.bf16.msra.mxu0 %v1222
  %1585 = vmatprep.subr.bf16.mxu0 0
  %1586 = vmatpush1.bf16.msra.mxu0 %v1221
  %1587 = vmatprep.subr.bf16.mxu0 0
  %1588 = vmatpush1.bf16.msra.mxu0 %v1220
  %1589 = vmatprep.subr.bf16.mxu0 0
  %1590 = vmatpush1.bf16.msra.mxu0 %v1219
  %1591 = vmatprep.subr.bf16.mxu0 0
  %1592 = vmatpush1.bf16.msra.mxu0 %v1218
  %1593 = vmatprep.subr.bf16.mxu0 0
  %1594 = vmatpush1.bf16.msra.mxu0 %v1217
  %1595 = vmatprep.subr.bf16.mxu0 0
  %1596 = vmatpush1.bf16.msra.mxu0 %v1216
  %1597 = vmatprep.subr.bf16.mxu0 0
  %1598 = vmatpush1.bf16.msra.mxu0 %v1215
  %1599 = vmatprep.subr.bf16.mxu0 0
  %1600 = vmatpush2.bf16.msra.mxu0 %v1230
  %1601 = vmatprep.subr.bf16.mxu0 0
  %1602 = vmatpush2.bf16.msra.mxu0 %v1229
  %1603 = vmatprep.subr.bf16.mxu0 0
  %1604 = vmatpush2.bf16.msra.mxu0 %v1228
  %1605 = vmatprep.subr.bf16.mxu0 0
  %1606 = vmatpush2.bf16.msra.mxu0 %v1227
  %1607 = vmatprep.subr.bf16.mxu0 0
  %1608 = vmatpush2.bf16.msra.mxu0 %v1226
  %1609 = vmatprep.subr.bf16.mxu0 0
  %1610 = vmatpush2.bf16.msra.mxu0 %v1225
  %1611 = vmatprep.subr.bf16.mxu0 0
  %1612 = vmatpush2.bf16.msra.mxu0 %v1224
  %1613 = vmatprep.subr.bf16.mxu0 0
  %1614 = vmatpush2.bf16.msra.mxu0 %v1223
  %1615 = vmatprep.mubr.bf16.mxu0 %v1520
  %1616 = vmatmul.mubr.bf16.gmra.mxu0 %v1519
  %v1617 = vpop.f32.mrf.mxu0
  %v1618 = vadd.f32 %v1266, %v1617
  %v1619 = vpop.f32.mrf.mxu0
  %v1620 = vpop.f32.mrf.mxu0
  %v1621 = vadd.f32 %v1271, %v1620
  %v1622 = vpop.f32.mrf.mxu0
  %1623 = vmatprep.mubr.bf16.mxu0 %v1522
  %1624 = vmatmul.mubr.bf16.gmra.mxu0 %v1521
  %v1625 = vpop.f32.mrf.mxu0
  %v1626 = vadd.f32 %v1276, %v1625
  %v1627 = vpop.f32.mrf.mxu0
  %v1628 = vpop.f32.mrf.mxu0
  %v1629 = vadd.f32 %v1281, %v1628
  %v1630 = vpop.f32.mrf.mxu0
  %1631 = vmatprep.mubr.bf16.mxu0 %v1524
  %1632 = vmatmul.mubr.bf16.gmra.mxu0 %v1523
  %v1633 = vpop.f32.mrf.mxu0
  %v1634 = vadd.f32 %v1286, %v1633
  %v1635 = vpop.f32.mrf.mxu0
  %v1636 = vpop.f32.mrf.mxu0
  %v1637 = vadd.f32 %v1291, %v1636
  %v1638 = vpop.f32.mrf.mxu0
  %1639 = vmatprep.mubr.bf16.mxu0 %v1526
  %1640 = vmatmul.mubr.bf16.gmra.mxu0 %v1525
  %v1641 = vpop.f32.mrf.mxu0
  %v1642 = vadd.f32 %v1296, %v1641
  %v1643 = vpop.f32.mrf.mxu0
  %v1644 = vpop.f32.mrf.mxu0
  %v1645 = vadd.f32 %v1301, %v1644
  %v1646 = vpop.f32.mrf.mxu0
  %1647 = vmatprep.mubr.bf16.mxu0 %v1528
  %1648 = vmatmul.mubr.bf16.gmra.mxu0 %v1527
  %v1649 = vpop.f32.mrf.mxu0
  %v1650 = vadd.f32 %v1306, %v1649
  %v1651 = vpop.f32.mrf.mxu0
  %v1652 = vpop.f32.mrf.mxu0
  %v1653 = vadd.f32 %v1311, %v1652
  %v1654 = vpop.f32.mrf.mxu0
  %1655 = vmatprep.mubr.bf16.mxu0 %v1530
  %1656 = vmatmul.mubr.bf16.gmra.mxu0 %v1529
  %v1657 = vpop.f32.mrf.mxu0
  %v1658 = vadd.f32 %v1316, %v1657
  %v1659 = vpop.f32.mrf.mxu0
  %v1660 = vpop.f32.mrf.mxu0
  %v1661 = vadd.f32 %v1321, %v1660
  %v1662 = vpop.f32.mrf.mxu0
  %1663 = vmatprep.mubr.bf16.mxu0 %v1532
  %1664 = vmatmul.mubr.bf16.gmra.mxu0 %v1531
  %v1665 = vpop.f32.mrf.mxu0
  %v1666 = vadd.f32 %v1326, %v1665
  %v1667 = vpop.f32.mrf.mxu0
  %v1668 = vpop.f32.mrf.mxu0
  %v1669 = vadd.f32 %v1331, %v1668
  %v1670 = vpop.f32.mrf.mxu0
  %1671 = vmatprep.mubr.bf16.mxu0 %v1534
  %1672 = vmatmul.mubr.bf16.gmra.mxu0 %v1533
  %v1673 = vpop.f32.mrf.mxu0
  %v1674 = vadd.f32 %v1336, %v1673
  %v1675 = vpop.f32.mrf.mxu0
  %v1676 = vpop.f32.mrf.mxu0
  %v1677 = vadd.f32 %v1341, %v1676
  %v1678 = vpop.f32.mrf.mxu0
  %1679 = vmatprep.mubr.bf16.mxu0 %v1536
  %1680 = vmatmul.mubr.bf16.gmra.mxu0 %v1535
  %v1681 = vpop.f32.mrf.mxu0
  %v1682 = vadd.f32 %v1346, %v1681
  %v1683 = vpop.f32.mrf.mxu0
  %v1684 = vpop.f32.mrf.mxu0
  %v1685 = vadd.f32 %v1351, %v1684
  %v1686 = vpop.f32.mrf.mxu0
  %1687 = vmatprep.mubr.bf16.mxu0 %v1538
  %1688 = vmatmul.mubr.bf16.gmra.mxu0 %v1537
  %v1689 = vpop.f32.mrf.mxu0
  %v1690 = vadd.f32 %v1356, %v1689
  %v1691 = vpop.f32.mrf.mxu0
  %v1692 = vpop.f32.mrf.mxu0
  %v1693 = vadd.f32 %v1361, %v1692
  %v1694 = vpop.f32.mrf.mxu0
  %1695 = vmatprep.mubr.bf16.mxu0 %v1540
  %1696 = vmatmul.mubr.bf16.gmra.mxu0 %v1539
  %v1697 = vpop.f32.mrf.mxu0
  %v1698 = vadd.f32 %v1366, %v1697
  %v1699 = vpop.f32.mrf.mxu0
  %v1700 = vpop.f32.mrf.mxu0
  %v1701 = vadd.f32 %v1371, %v1700
  %v1702 = vpop.f32.mrf.mxu0
  %1703 = vmatprep.mubr.bf16.mxu0 %v1542
  %1704 = vmatmul.mubr.bf16.gmra.mxu0 %v1541
  %v1705 = vpop.f32.mrf.mxu0
  %v1706 = vadd.f32 %v1376, %v1705
  %v1707 = vpop.f32.mrf.mxu0
  %v1708 = vpop.f32.mrf.mxu0
  %v1709 = vadd.f32 %v1381, %v1708
  %v1710 = vpop.f32.mrf.mxu0
  %1711 = vmatprep.mubr.bf16.mxu0 %v1544
  %1712 = vmatmul.mubr.bf16.gmra.mxu0 %v1543
  %v1713 = vpop.f32.mrf.mxu0
  %v1714 = vadd.f32 %v1386, %v1713
  %v1715 = vpop.f32.mrf.mxu0
  %v1716 = vpop.f32.mrf.mxu0
  %v1717 = vadd.f32 %v1391, %v1716
  %v1718 = vpop.f32.mrf.mxu0
  %1719 = vmatprep.mubr.bf16.mxu0 %v1546
  %1720 = vmatmul.mubr.bf16.gmra.mxu0 %v1545
  %v1721 = vpop.f32.mrf.mxu0
  %v1722 = vadd.f32 %v1396, %v1721
  %v1723 = vpop.f32.mrf.mxu0
  %v1724 = vpop.f32.mrf.mxu0
  %v1725 = vadd.f32 %v1401, %v1724
  %v1726 = vpop.f32.mrf.mxu0
  %1727 = vmatprep.mubr.bf16.mxu0 %v1548
  %1728 = vmatmul.mubr.bf16.gmra.mxu0 %v1547
  %v1729 = vpop.f32.mrf.mxu0
  %v1730 = vadd.f32 %v1406, %v1729
  %v1731 = vpop.f32.mrf.mxu0
  %v1732 = vpop.f32.mrf.mxu0
  %v1733 = vadd.f32 %v1411, %v1732
  %v1734 = vpop.f32.mrf.mxu0
  %1735 = vmatprep.mubr.bf16.mxu0 %v1550
  %1736 = vmatmul.mubr.bf16.gmra.mxu0 %v1549
  %v1737 = vpop.f32.mrf.mxu0
  %v1738 = vadd.f32 %v1416, %v1737
  %v1739 = vpop.f32.mrf.mxu0
  %v1740 = vpop.f32.mrf.mxu0
  %v1741 = vadd.f32 %v1421, %v1740
  %v1742 = vpop.f32.mrf.mxu0
  %1743 = vdwg.mxu0
  %v1744 = vmax.f32 %v1618, 0.0
  %v1745 = vmax.f32 %v1621, 0.0
  %v1746 = vmax.f32 %v1626, 0.0
  %v1747 = vmax.f32 %v1629, 0.0
  %v1748 = vmax.f32 %v1634, 0.0
  %v1749 = vmax.f32 %v1637, 0.0
  %v1750 = vmax.f32 %v1642, 0.0
  %v1751 = vmax.f32 %v1645, 0.0
  %v1752 = vmax.f32 %v1650, 0.0
  %v1753 = vmax.f32 %v1653, 0.0
  %v1754 = vmax.f32 %v1658, 0.0
  %v1755 = vmax.f32 %v1661, 0.0
  %v1756 = vmax.f32 %v1666, 0.0
  %v1757 = vmax.f32 %v1669, 0.0
  %v1758 = vmax.f32 %v1674, 0.0
  %v1759 = vmax.f32 %v1677, 0.0
  %v1760 = vmax.f32 %v1682, 0.0
  %v1761 = vmax.f32 %v1685, 0.0
  %v1762 = vmax.f32 %v1690, 0.0
  %v1763 = vmax.f32 %v1693, 0.0
  %v1764 = vmax.f32 %v1698, 0.0
  %v1765 = vmax.f32 %v1701, 0.0
  %v1766 = vmax.f32 %v1706, 0.0
  %v1767 = vmax.f32 %v1709, 0.0
  %v1768 = vmax.f32 %v1714, 0.0
  %v1769 = vmax.f32 %v1717, 0.0
  %v1770 = vmax.f32 %v1722, 0.0
  %v1771 = vmax.f32 %v1725, 0.0
  %v1772 = vmax.f32 %v1730, 0.0
  %v1773 = vmax.f32 %v1733, 0.0
  %v1774 = vmax.f32 %v1738, 0.0
  %v1775 = vmax.f32 %v1741, 0.0
  %v1776 = vld [vmem:[%s7] sm:$0xff]
  %v1777 = vld [vmem:[%s7 + $0x8] sm:$0xff]
  %v1778 = vld [vmem:[%s7 + $0x10] sm:$0xff]
  %v1779 = vld [vmem:[%s7 + $0x18] sm:$0xff]
  %v1780 = vld [vmem:[%s7 + $0x20] sm:$0xff]
  %v1781 = vld [vmem:[%s7 + $0x28] sm:$0xff]
  %v1782 = vld [vmem:[%s7 + $0x30] sm:$0xff]
  %v1783 = vld [vmem:[%s7 + $0x38] sm:$0xff]
  %v1784 = vld [vmem:[%s7 + $0x40] sm:$0xff]
  %v1785 = vld [vmem:[%s7 + $0x48] sm:$0xff]
  %v1786 = vld [vmem:[%s7 + $0x50] sm:$0xff]
  %v1787 = vld [vmem:[%s7 + $0x58] sm:$0xff]
  %v1788 = vld [vmem:[%s7 + $0x60] sm:$0xff]
  %v1789 = vld [vmem:[%s7 + $0x68] sm:$0xff]
  %v1790 = vld [vmem:[%s7 + $0x70] sm:$0xff]
  %v1791 = vld [vmem:[%s7 + $0x78] sm:$0xff]
  %v1792 = vld [vmem:[%s7 + $0x80] sm:$0xff]
  %v1793 = vld [vmem:[%s7 + $0x88] sm:$0xff]
  %v1794 = vld [vmem:[%s7 + $0x90] sm:$0xff]
  %v1795 = vld [vmem:[%s7 + $0x98] sm:$0xff]
  %v1796 = vld [vmem:[%s7 + $0xa0] sm:$0xff]
  %v1797 = vld [vmem:[%s7 + $0xa8] sm:$0xff]
  %v1798 = vld [vmem:[%s7 + $0xb0] sm:$0xff]
  %v1799 = vld [vmem:[%s7 + $0xb8] sm:$0xff]
  %v1800 = vld [vmem:[%s7 + $0xc0] sm:$0xff]
  %v1801 = vld [vmem:[%s7 + $0xc8] sm:$0xff]
  %v1802 = vld [vmem:[%s7 + $0xd0] sm:$0xff]
  %v1803 = vld [vmem:[%s7 + $0xd8] sm:$0xff]
  %v1804 = vld [vmem:[%s7 + $0xe0] sm:$0xff]
  %v1805 = vld [vmem:[%s7 + $0xe8] sm:$0xff]
  %v1806 = vld [vmem:[%s7 + $0xf0] sm:$0xff]
  %v1807 = vld [vmem:[%s7 + $0xf8] sm:$0xff]
  %v1808 = vpack.c.bf16 %v1745, %v1744
  %v1809 = vpack.c.bf16 %v1747, %v1746
  %v1810 = vpack.c.bf16 %v1749, %v1748
  %v1811 = vpack.c.bf16 %v1751, %v1750
  %v1812 = vpack.c.bf16 %v1753, %v1752
  %v1813 = vpack.c.bf16 %v1755, %v1754
  %v1814 = vpack.c.bf16 %v1757, %v1756
  %v1815 = vpack.c.bf16 %v1759, %v1758
  %v1816 = vpack.c.bf16 %v1761, %v1760
  %v1817 = vpack.c.bf16 %v1763, %v1762
  %v1818 = vpack.c.bf16 %v1765, %v1764
  %v1819 = vpack.c.bf16 %v1767, %v1766
  %v1820 = vpack.c.bf16 %v1769, %v1768
  %v1821 = vpack.c.bf16 %v1771, %v1770
  %v1822 = vpack.c.bf16 %v1773, %v1772
  %v1823 = vpack.c.bf16 %v1775, %v1774
  %v1824 = vld [vmem:[%s8] sm:$0xff]
  %v1825 = vld [vmem:[%s8 + $0x8] sm:$0xff]
  %v1826 = vld [vmem:[%s8 + $0x10] sm:$0xff]
  %v1827 = vld [vmem:[%s8 + $0x18] sm:$0xff]
  %v1828 = vld [vmem:[%s8 + $0x20] sm:$0xff]
  %v1829 = vld [vmem:[%s8 + $0x28] sm:$0xff]
  %v1830 = vld [vmem:[%s8 + $0x30] sm:$0xff]
  %v1831 = vld [vmem:[%s8 + $0x38] sm:$0xff]
  %v1832 = vld [vmem:[%s8 + $0x40] sm:$0xff]
  %v1833 = vld [vmem:[%s8 + $0x48] sm:$0xff]
  %v1834 = vld [vmem:[%s8 + $0x50] sm:$0xff]
  %v1835 = vld [vmem:[%s8 + $0x58] sm:$0xff]
  %v1836 = vld [vmem:[%s8 + $0x60] sm:$0xff]
  %v1837 = vld [vmem:[%s8 + $0x68] sm:$0xff]
  %v1838 = vld [vmem:[%s8 + $0x70] sm:$0xff]
  %v1839 = vld [vmem:[%s8 + $0x78] sm:$0xff]
  %v1840 = vld [vmem:[%s8 + $0x80] sm:$0xff]
  %v1841 = vld [vmem:[%s8 + $0x88] sm:$0xff]
  %v1842 = vld [vmem:[%s8 + $0x90] sm:$0xff]
  %v1843 = vld [vmem:[%s8 + $0x98] sm:$0xff]
  %v1844 = vld [vmem:[%s8 + $0xa0] sm:$0xff]
  %v1845 = vld [vmem:[%s8 + $0xa8] sm:$0xff]
  %v1846 = vld [vmem:[%s8 + $0xb0] sm:$0xff]
  %v1847 = vld [vmem:[%s8 + $0xb8] sm:$0xff]
  %v1848 = vld [vmem:[%s8 + $0xc0] sm:$0xff]
  %v1849 = vld [vmem:[%s8 + $0xc8] sm:$0xff]
  %v1850 = vld [vmem:[%s8 + $0xd0] sm:$0xff]
  %v1851 = vld [vmem:[%s8 + $0xd8] sm:$0xff]
  %v1852 = vld [vmem:[%s8 + $0xe0] sm:$0xff]
  %v1853 = vld [vmem:[%s8 + $0xe8] sm:$0xff]
  %v1854 = vld [vmem:[%s8 + $0xf0] sm:$0xff]
  %v1855 = vld [vmem:[%s8 + $0xf8] sm:$0xff]
  %1857 = vset.pattern.permute.xlu0 0
  %1858 = vperm.xlu0 %1857, %v1824
  %v1859 = vpop.permute.xlu0 %1858
  %1862 = vset.pattern.permute.xlu0 0
  %1863 = vperm.xlu0 %1862, %v1825
  %v1864 = vpop.permute.xlu0 %1863
  %1867 = vset.pattern.permute.xlu0 0
  %1868 = vperm.xlu0 %1867, %v1826
  %v1869 = vpop.permute.xlu0 %1868
  %1872 = vset.pattern.permute.xlu0 0
  %1873 = vperm.xlu0 %1872, %v1827
  %v1874 = vpop.permute.xlu0 %1873
  %1877 = vset.pattern.permute.xlu0 0
  %1878 = vperm.xlu0 %1877, %v1828
  %v1879 = vpop.permute.xlu0 %1878
  %1882 = vset.pattern.permute.xlu0 0
  %1883 = vperm.xlu0 %1882, %v1829
  %v1884 = vpop.permute.xlu0 %1883
  %1887 = vset.pattern.permute.xlu0 0
  %1888 = vperm.xlu0 %1887, %v1830
  %v1889 = vpop.permute.xlu0 %1888
  %1892 = vset.pattern.permute.xlu0 0
  %1893 = vperm.xlu0 %1892, %v1831
  %v1894 = vpop.permute.xlu0 %1893
  %1897 = vset.pattern.permute.xlu0 0
  %1898 = vperm.xlu0 %1897, %v1832
  %v1899 = vpop.permute.xlu0 %1898
  %1902 = vset.pattern.permute.xlu0 0
  %1903 = vperm.xlu0 %1902, %v1833
  %v1904 = vpop.permute.xlu0 %1903
  %1907 = vset.pattern.permute.xlu0 0
  %1908 = vperm.xlu0 %1907, %v1834
  %v1909 = vpop.permute.xlu0 %1908
  %1912 = vset.pattern.permute.xlu0 0
  %1913 = vperm.xlu0 %1912, %v1835
  %v1914 = vpop.permute.xlu0 %1913
  %1917 = vset.pattern.permute.xlu0 0
  %1918 = vperm.xlu0 %1917, %v1836
  %v1919 = vpop.permute.xlu0 %1918
  %1922 = vset.pattern.permute.xlu0 0
  %1923 = vperm.xlu0 %1922, %v1837
  %v1924 = vpop.permute.xlu0 %1923
  %1927 = vset.pattern.permute.xlu0 0
  %1928 = vperm.xlu0 %1927, %v1838
  %v1929 = vpop.permute.xlu0 %1928
  %1932 = vset.pattern.permute.xlu0 0
  %1933 = vperm.xlu0 %1932, %v1839
  %v1934 = vpop.permute.xlu0 %1933
  %1937 = vset.pattern.permute.xlu0 0
  %1938 = vperm.xlu0 %1937, %v1840
  %v1939 = vpop.permute.xlu0 %1938
  %1942 = vset.pattern.permute.xlu0 0
  %1943 = vperm.xlu0 %1942, %v1841
  %v1944 = vpop.permute.xlu0 %1943
  %1947 = vset.pattern.permute.xlu0 0
  %1948 = vperm.xlu0 %1947, %v1842
  %v1949 = vpop.permute.xlu0 %1948
  %1952 = vset.pattern.permute.xlu0 0
  %1953 = vperm.xlu0 %1952, %v1843
  %v1954 = vpop.permute.xlu0 %1953
  %1957 = vset.pattern.permute.xlu0 0
  %1958 = vperm.xlu0 %1957, %v1844
  %v1959 = vpop.permute.xlu0 %1958
  %1962 = vset.pattern.permute.xlu0 0
  %1963 = vperm.xlu0 %1962, %v1845
  %v1964 = vpop.permute.xlu0 %1963
  %1967 = vset.pattern.permute.xlu0 0
  %1968 = vperm.xlu0 %1967, %v1846
  %v1969 = vpop.permute.xlu0 %1968
  %1972 = vset.pattern.permute.xlu0 0
  %1973 = vperm.xlu0 %1972, %v1847
  %v1974 = vpop.permute.xlu0 %1973
  %1977 = vset.pattern.permute.xlu0 0
  %1978 = vperm.xlu0 %1977, %v1848
  %v1979 = vpop.permute.xlu0 %1978
  %1982 = vset.pattern.permute.xlu0 0
  %1983 = vperm.xlu0 %1982, %v1849
  %v1984 = vpop.permute.xlu0 %1983
  %1987 = vset.pattern.permute.xlu0 0
  %1988 = vperm.xlu0 %1987, %v1850
  %v1989 = vpop.permute.xlu0 %1988
  %1992 = vset.pattern.permute.xlu0 0
  %1993 = vperm.xlu0 %1992, %v1851
  %v1994 = vpop.permute.xlu0 %1993
  %1997 = vset.pattern.permute.xlu0 0
  %1998 = vperm.xlu0 %1997, %v1852
  %v1999 = vpop.permute.xlu0 %1998
  %2002 = vset.pattern.permute.xlu0 0
  %2003 = vperm.xlu0 %2002, %v1853
  %v2004 = vpop.permute.xlu0 %2003
  %2007 = vset.pattern.permute.xlu0 0
  %2008 = vperm.xlu0 %2007, %v1854
  %v2009 = vpop.permute.xlu0 %2008
  %2012 = vset.pattern.permute.xlu0 0
  %2013 = vperm.xlu0 %2012, %v1855
  %v2014 = vpop.permute.xlu0 %2013
  %v2048 = vunpack.c.l.b16 %v1776
  %v2049 = vunpack.c.h.b16 %v1776
  %v2050 = vunpack.c.l.b16 %v1777
  %v2051 = vunpack.c.h.b16 %v1777
  %v2052 = vunpack.c.l.b16 %v1778
  %v2053 = vunpack.c.h.b16 %v1778
  %v2054 = vunpack.c.l.b16 %v1779
  %v2055 = vunpack.c.h.b16 %v1779
  %v2056 = vunpack.c.l.b16 %v1780
  %v2057 = vunpack.c.h.b16 %v1780
  %v2058 = vunpack.c.l.b16 %v1781
  %v2059 = vunpack.c.h.b16 %v1781
  %v2060 = vunpack.c.l.b16 %v1782
  %v2061 = vunpack.c.h.b16 %v1782
  %v2062 = vunpack.c.l.b16 %v1783
  %v2063 = vunpack.c.h.b16 %v1783
  %v2064 = vunpack.c.l.b16 %v1784
  %v2065 = vunpack.c.h.b16 %v1784
  %v2066 = vunpack.c.l.b16 %v1785
  %v2067 = vunpack.c.h.b16 %v1785
  %v2068 = vunpack.c.l.b16 %v1786
  %v2069 = vunpack.c.h.b16 %v1786
  %v2070 = vunpack.c.l.b16 %v1787
  %v2071 = vunpack.c.h.b16 %v1787
  %v2072 = vunpack.c.l.b16 %v1788
  %v2073 = vunpack.c.h.b16 %v1788
  %v2074 = vunpack.c.l.b16 %v1789
  %v2075 = vunpack.c.h.b16 %v1789
  %v2076 = vunpack.c.l.b16 %v1790
  %v2077 = vunpack.c.h.b16 %v1790
  %v2078 = vunpack.c.l.b16 %v1791
  %v2079 = vunpack.c.h.b16 %v1791
  %v2080 = vunpack.c.l.b16 %v1792
  %v2081 = vunpack.c.h.b16 %v1792
  %v2082 = vunpack.c.l.b16 %v1793
  %v2083 = vunpack.c.h.b16 %v1793
  %v2084 = vunpack.c.l.b16 %v1794
  %v2085 = vunpack.c.h.b16 %v1794
  %v2086 = vunpack.c.l.b16 %v1795
  %v2087 = vunpack.c.h.b16 %v1795
  %v2088 = vunpack.c.l.b16 %v1796
  %v2089 = vunpack.c.h.b16 %v1796
  %v2090 = vunpack.c.l.b16 %v1797
  %v2091 = vunpack.c.h.b16 %v1797
  %v2092 = vunpack.c.l.b16 %v1798
  %v2093 = vunpack.c.h.b16 %v1798
  %v2094 = vunpack.c.l.b16 %v1799
  %v2095 = vunpack.c.h.b16 %v1799
  %v2096 = vunpack.c.l.b16 %v1800
  %v2097 = vunpack.c.h.b16 %v1800
  %v2098 = vunpack.c.l.b16 %v1801
  %v2099 = vunpack.c.h.b16 %v1801
  %v2100 = vunpack.c.l.b16 %v1802
  %v2101 = vunpack.c.h.b16 %v1802
  %v2102 = vunpack.c.l.b16 %v1803
  %v2103 = vunpack.c.h.b16 %v1803
  %v2104 = vunpack.c.l.b16 %v1804
  %v2105 = vunpack.c.h.b16 %v1804
  %v2106 = vunpack.c.l.b16 %v1805
  %v2107 = vunpack.c.h.b16 %v1805
  %v2108 = vunpack.c.l.b16 %v1806
  %v2109 = vunpack.c.h.b16 %v1806
  %v2110 = vunpack.c.l.b16 %v1807
  %v2111 = vunpack.c.h.b16 %v1807
  %v2112 = vpack.c.b16 %v2050, %v2048
  %v2113 = vpack.c.b16 %v2051, %v2049
  %v2114 = vpack.c.b16 %v2054, %v2052
  %v2115 = vpack.c.b16 %v2055, %v2053
  %v2116 = vpack.c.b16 %v2058, %v2056
  %v2117 = vpack.c.b16 %v2059, %v2057
  %v2118 = vpack.c.b16 %v2062, %v2060
  %v2119 = vpack.c.b16 %v2063, %v2061
  %v2120 = vpack.c.b16 %v2066, %v2064
  %v2121 = vpack.c.b16 %v2067, %v2065
  %v2122 = vpack.c.b16 %v2070, %v2068
  %v2123 = vpack.c.b16 %v2071, %v2069
  %v2124 = vpack.c.b16 %v2074, %v2072
  %v2125 = vpack.c.b16 %v2075, %v2073
  %v2126 = vpack.c.b16 %v2078, %v2076
  %v2127 = vpack.c.b16 %v2079, %v2077
  %v2128 = vpack.c.b16 %v2082, %v2080
  %v2129 = vpack.c.b16 %v2083, %v2081
  %v2130 = vpack.c.b16 %v2086, %v2084
  %v2131 = vpack.c.b16 %v2087, %v2085
  %v2132 = vpack.c.b16 %v2090, %v2088
  %v2133 = vpack.c.b16 %v2091, %v2089
  %v2134 = vpack.c.b16 %v2094, %v2092
  %v2135 = vpack.c.b16 %v2095, %v2093
  %v2136 = vpack.c.b16 %v2098, %v2096
  %v2137 = vpack.c.b16 %v2099, %v2097
  %v2138 = vpack.c.b16 %v2102, %v2100
  %v2139 = vpack.c.b16 %v2103, %v2101
  %v2140 = vpack.c.b16 %v2106, %v2104
  %v2141 = vpack.c.b16 %v2107, %v2105
  %v2142 = vpack.c.b16 %v2110, %v2108
  %v2143 = vpack.c.b16 %v2111, %v2109
  %2176 = vmatprep.subr.bf16.mxu0 0
  %2177 = vmatpush1.bf16.msra.mxu0 %v1815
  %2178 = vmatprep.subr.bf16.mxu0 0
  %2179 = vmatpush1.bf16.msra.mxu0 %v1814
  %2180 = vmatprep.subr.bf16.mxu0 0
  %2181 = vmatpush1.bf16.msra.mxu0 %v1813
  %2182 = vmatprep.subr.bf16.mxu0 0
  %2183 = vmatpush1.bf16.msra.mxu0 %v1812
  %2184 = vmatprep.subr.bf16.mxu0 0
  %2185 = vmatpush1.bf16.msra.mxu0 %v1811
  %2186 = vmatprep.subr.bf16.mxu0 0
  %2187 = vmatpush1.bf16.msra.mxu0 %v1810
  %2188 = vmatprep.subr.bf16.mxu0 0
  %2189 = vmatpush1.bf16.msra.mxu0 %v1809
  %2190 = vmatprep.subr.bf16.mxu0 0
  %2191 = vmatpush1.bf16.msra.mxu0 %v1808
  %2192 = vmatprep.subr.bf16.mxu0 0
  %2193 = vmatpush2.bf16.msra.mxu0 %v1823
  %2194 = vmatprep.subr.bf16.mxu0 0
  %2195 = vmatpush2.bf16.msra.mxu0 %v1822
  %2196 = vmatprep.subr.bf16.mxu0 0
  %2197 = vmatpush2.bf16.msra.mxu0 %v1821
  %2198 = vmatprep.subr.bf16.mxu0 0
  %2199 = vmatpush2.bf16.msra.mxu0 %v1820
  %2200 = vmatprep.subr.bf16.mxu0 0
  %2201 = vmatpush2.bf16.msra.mxu0 %v1819
  %2202 = vmatprep.subr.bf16.mxu0 0
  %2203 = vmatpush2.bf16.msra.mxu0 %v1818
  %2204 = vmatprep.subr.bf16.mxu0 0
  %2205 = vmatpush2.bf16.msra.mxu0 %v1817
  %2206 = vmatprep.subr.bf16.mxu0 0
  %2207 = vmatpush2.bf16.msra.mxu0 %v1816
  %2208 = vmatprep.mubr.bf16.mxu0 %v2113
  %2209 = vmatmul.mubr.bf16.gmra.mxu0 %v2112
  %v2210 = vpop.f32.mrf.mxu0
  %v2211 = vadd.f32 %v1859, %v2210
  %v2212 = vpop.f32.mrf.mxu0
  %v2213 = vpop.f32.mrf.mxu0
  %v2214 = vadd.f32 %v1864, %v2213
  %v2215 = vpop.f32.mrf.mxu0
  %2216 = vmatprep.mubr.bf16.mxu0 %v2115
  %2217 = vmatmul.mubr.bf16.gmra.mxu0 %v2114
  %v2218 = vpop.f32.mrf.mxu0
  %v2219 = vadd.f32 %v1869, %v2218
  %v2220 = vpop.f32.mrf.mxu0
  %v2221 = vpop.f32.mrf.mxu0
  %v2222 = vadd.f32 %v1874, %v2221
  %v2223 = vpop.f32.mrf.mxu0
  %2224 = vmatprep.mubr.bf16.mxu0 %v2117
  %2225 = vmatmul.mubr.bf16.gmra.mxu0 %v2116
  %v2226 = vpop.f32.mrf.mxu0
  %v2227 = vadd.f32 %v1879, %v2226
  %v2228 = vpop.f32.mrf.mxu0
  %v2229 = vpop.f32.mrf.mxu0
  %v2230 = vadd.f32 %v1884, %v2229
  %v2231 = vpop.f32.mrf.mxu0
  %2232 = vmatprep.mubr.bf16.mxu0 %v2119
  %2233 = vmatmul.mubr.bf16.gmra.mxu0 %v2118
  %v2234 = vpop.f32.mrf.mxu0
  %v2235 = vadd.f32 %v1889, %v2234
  %v2236 = vpop.f32.mrf.mxu0
  %v2237 = vpop.f32.mrf.mxu0
  %v2238 = vadd.f32 %v1894, %v2237
  %v2239 = vpop.f32.mrf.mxu0
  %2240 = vmatprep.mubr.bf16.mxu0 %v2121
  %2241 = vmatmul.mubr.bf16.gmra.mxu0 %v2120
  %v2242 = vpop.f32.mrf.mxu0
  %v2243 = vadd.f32 %v1899, %v2242
  %v2244 = vpop.f32.mrf.mxu0
  %v2245 = vpop.f32.mrf.mxu0
  %v2246 = vadd.f32 %v1904, %v2245
  %v2247 = vpop.f32.mrf.mxu0
  %2248 = vmatprep.mubr.bf16.mxu0 %v2123
  %2249 = vmatmul.mubr.bf16.gmra.mxu0 %v2122
  %v2250 = vpop.f32.mrf.mxu0
  %v2251 = vadd.f32 %v1909, %v2250
  %v2252 = vpop.f32.mrf.mxu0
  %v2253 = vpop.f32.mrf.mxu0
  %v2254 = vadd.f32 %v1914, %v2253
  %v2255 = vpop.f32.mrf.mxu0
  %2256 = vmatprep.mubr.bf16.mxu0 %v2125
  %2257 = vmatmul.mubr.bf16.gmra.mxu0 %v2124
  %v2258 = vpop.f32.mrf.mxu0
  %v2259 = vadd.f32 %v1919, %v2258
  %v2260 = vpop.f32.mrf.mxu0
  %v2261 = vpop.f32.mrf.mxu0
  %v2262 = vadd.f32 %v1924, %v2261
  %v2263 = vpop.f32.mrf.mxu0
  %2264 = vmatprep.mubr.bf16.mxu0 %v2127
  %2265 = vmatmul.mubr.bf16.gmra.mxu0 %v2126
  %v2266 = vpop.f32.mrf.mxu0
  %v2267 = vadd.f32 %v1929, %v2266
  %v2268 = vpop.f32.mrf.mxu0
  %v2269 = vpop.f32.mrf.mxu0
  %v2270 = vadd.f32 %v1934, %v2269
  %v2271 = vpop.f32.mrf.mxu0
  %2272 = vmatprep.mubr.bf16.mxu0 %v2129
  %2273 = vmatmul.mubr.bf16.gmra.mxu0 %v2128
  %v2274 = vpop.f32.mrf.mxu0
  %v2275 = vadd.f32 %v1939, %v2274
  %v2276 = vpop.f32.mrf.mxu0
  %v2277 = vpop.f32.mrf.mxu0
  %v2278 = vadd.f32 %v1944, %v2277
  %v2279 = vpop.f32.mrf.mxu0
  %2280 = vmatprep.mubr.bf16.mxu0 %v2131
  %2281 = vmatmul.mubr.bf16.gmra.mxu0 %v2130
  %v2282 = vpop.f32.mrf.mxu0
  %v2283 = vadd.f32 %v1949, %v2282
  %v2284 = vpop.f32.mrf.mxu0
  %v2285 = vpop.f32.mrf.mxu0
  %v2286 = vadd.f32 %v1954, %v2285
  %v2287 = vpop.f32.mrf.mxu0
  %2288 = vmatprep.mubr.bf16.mxu0 %v2133
  %2289 = vmatmul.mubr.bf16.gmra.mxu0 %v2132
  %v2290 = vpop.f32.mrf.mxu0
  %v2291 = vadd.f32 %v1959, %v2290
  %v2292 = vpop.f32.mrf.mxu0
  %v2293 = vpop.f32.mrf.mxu0
  %v2294 = vadd.f32 %v1964, %v2293
  %v2295 = vpop.f32.mrf.mxu0
  %2296 = vmatprep.mubr.bf16.mxu0 %v2135
  %2297 = vmatmul.mubr.bf16.gmra.mxu0 %v2134
  %v2298 = vpop.f32.mrf.mxu0
  %v2299 = vadd.f32 %v1969, %v2298
  %v2300 = vpop.f32.mrf.mxu0
  %v2301 = vpop.f32.mrf.mxu0
  %v2302 = vadd.f32 %v1974, %v2301
  %v2303 = vpop.f32.mrf.mxu0
  %2304 = vmatprep.mubr.bf16.mxu0 %v2137
  %2305 = vmatmul.mubr.bf16.gmra.mxu0 %v2136
  %v2306 = vpop.f32.mrf.mxu0
  %v2307 = vadd.f32 %v1979, %v2306
  %v2308 = vpop.f32.mrf.mxu0
  %v2309 = vpop.f32.mrf.mxu0
  %v2310 = vadd.f32 %v1984, %v2309
  %v2311 = vpop.f32.mrf.mxu0
  %2312 = vmatprep.mubr.bf16.mxu0 %v2139
  %2313 = vmatmul.mubr.bf16.gmra.mxu0 %v2138
  %v2314 = vpop.f32.mrf.mxu0
  %v2315 = vadd.f32 %v1989, %v2314
  %v2316 = vpop.f32.mrf.mxu0
  %v2317 = vpop.f32.mrf.mxu0
  %v2318 = vadd.f32 %v1994, %v2317
  %v2319 = vpop.f32.mrf.mxu0
  %2320 = vmatprep.mubr.bf16.mxu0 %v2141
  %2321 = vmatmul.mubr.bf16.gmra.mxu0 %v2140
  %v2322 = vpop.f32.mrf.mxu0
  %v2323 = vadd.f32 %v1999, %v2322
  %v2324 = vpop.f32.mrf.mxu0
  %v2325 = vpop.f32.mrf.mxu0
  %v2326 = vadd.f32 %v2004, %v2325
  %v2327 = vpop.f32.mrf.mxu0
  %2328 = vmatprep.mubr.bf16.mxu0 %v2143
  %2329 = vmatmul.mubr.bf16.gmra.mxu0 %v2142
  %v2330 = vpop.f32.mrf.mxu0
  %v2331 = vadd.f32 %v2009, %v2330
  %v2332 = vpop.f32.mrf.mxu0
  %v2333 = vpop.f32.mrf.mxu0
  %v2334 = vadd.f32 %v2014, %v2333
  %v2335 = vpop.f32.mrf.mxu0
  %2336 = vdwg.mxu0
  %v2337 = vmax.f32 %v2211, 0.0
  %v2338 = vmax.f32 %v2214, 0.0
  %v2339 = vmax.f32 %v2219, 0.0
  %v2340 = vmax.f32 %v2222, 0.0
  %v2341 = vmax.f32 %v2227, 0.0
  %v2342 = vmax.f32 %v2230, 0.0
  %v2343 = vmax.f32 %v2235, 0.0
  %v2344 = vmax.f32 %v2238, 0.0
  %v2345 = vmax.f32 %v2243, 0.0
  %v2346 = vmax.f32 %v2246, 0.0
  %v2347 = vmax.f32 %v2251, 0.0
  %v2348 = vmax.f32 %v2254, 0.0
  %v2349 = vmax.f32 %v2259, 0.0
  %v2350 = vmax.f32 %v2262, 0.0
  %v2351 = vmax.f32 %v2267, 0.0
  %v2352 = vmax.f32 %v2270, 0.0
  %v2353 = vmax.f32 %v2275, 0.0
  %v2354 = vmax.f32 %v2278, 0.0
  %v2355 = vmax.f32 %v2283, 0.0
  %v2356 = vmax.f32 %v2286, 0.0
  %v2357 = vmax.f32 %v2291, 0.0
  %v2358 = vmax.f32 %v2294, 0.0
  %v2359 = vmax.f32 %v2299, 0.0
  %v2360 = vmax.f32 %v2302, 0.0
  %v2361 = vmax.f32 %v2307, 0.0
  %v2362 = vmax.f32 %v2310, 0.0
  %v2363 = vmax.f32 %v2315, 0.0
  %v2364 = vmax.f32 %v2318, 0.0
  %v2365 = vmax.f32 %v2323, 0.0
  %v2366 = vmax.f32 %v2326, 0.0
  %v2367 = vmax.f32 %v2331, 0.0
  %v2368 = vmax.f32 %v2334, 0.0
  %v2369 = vld [vmem:[%s9] sm:$0xff]
  %v2370 = vld [vmem:[%s9 + $0x8] sm:$0xff]
  %v2371 = vld [vmem:[%s9 + $0x10] sm:$0xff]
  %v2372 = vld [vmem:[%s9 + $0x18] sm:$0xff]
  %v2373 = vld [vmem:[%s9 + $0x20] sm:$0xff]
  %v2374 = vld [vmem:[%s9 + $0x28] sm:$0xff]
  %v2375 = vld [vmem:[%s9 + $0x30] sm:$0xff]
  %v2376 = vld [vmem:[%s9 + $0x38] sm:$0xff]
  %v2377 = vld [vmem:[%s9 + $0x40] sm:$0xff]
  %v2378 = vld [vmem:[%s9 + $0x48] sm:$0xff]
  %v2379 = vld [vmem:[%s9 + $0x50] sm:$0xff]
  %v2380 = vld [vmem:[%s9 + $0x58] sm:$0xff]
  %v2381 = vld [vmem:[%s9 + $0x60] sm:$0xff]
  %v2382 = vld [vmem:[%s9 + $0x68] sm:$0xff]
  %v2383 = vld [vmem:[%s9 + $0x70] sm:$0xff]
  %v2384 = vld [vmem:[%s9 + $0x78] sm:$0xff]
  %v2385 = vld [vmem:[%s9 + $0x80] sm:$0xff]
  %v2386 = vld [vmem:[%s9 + $0x88] sm:$0xff]
  %v2387 = vld [vmem:[%s9 + $0x90] sm:$0xff]
  %v2388 = vld [vmem:[%s9 + $0x98] sm:$0xff]
  %v2389 = vld [vmem:[%s9 + $0xa0] sm:$0xff]
  %v2390 = vld [vmem:[%s9 + $0xa8] sm:$0xff]
  %v2391 = vld [vmem:[%s9 + $0xb0] sm:$0xff]
  %v2392 = vld [vmem:[%s9 + $0xb8] sm:$0xff]
  %v2393 = vld [vmem:[%s9 + $0xc0] sm:$0xff]
  %v2394 = vld [vmem:[%s9 + $0xc8] sm:$0xff]
  %v2395 = vld [vmem:[%s9 + $0xd0] sm:$0xff]
  %v2396 = vld [vmem:[%s9 + $0xd8] sm:$0xff]
  %v2397 = vld [vmem:[%s9 + $0xe0] sm:$0xff]
  %v2398 = vld [vmem:[%s9 + $0xe8] sm:$0xff]
  %v2399 = vld [vmem:[%s9 + $0xf0] sm:$0xff]
  %v2400 = vld [vmem:[%s9 + $0xf8] sm:$0xff]
  %2402 = vset.pattern.permute.xlu0 0
  %2403 = vperm.xlu0 %2402, %v2369
  %v2404 = vpop.permute.xlu0 %2403
  %2407 = vset.pattern.permute.xlu0 0
  %2408 = vperm.xlu0 %2407, %v2370
  %v2409 = vpop.permute.xlu0 %2408
  %2412 = vset.pattern.permute.xlu0 0
  %2413 = vperm.xlu0 %2412, %v2371
  %v2414 = vpop.permute.xlu0 %2413
  %2417 = vset.pattern.permute.xlu0 0
  %2418 = vperm.xlu0 %2417, %v2372
  %v2419 = vpop.permute.xlu0 %2418
  %2422 = vset.pattern.permute.xlu0 0
  %2423 = vperm.xlu0 %2422, %v2373
  %v2424 = vpop.permute.xlu0 %2423
  %2427 = vset.pattern.permute.xlu0 0
  %2428 = vperm.xlu0 %2427, %v2374
  %v2429 = vpop.permute.xlu0 %2428
  %2432 = vset.pattern.permute.xlu0 0
  %2433 = vperm.xlu0 %2432, %v2375
  %v2434 = vpop.permute.xlu0 %2433
  %2437 = vset.pattern.permute.xlu0 0
  %2438 = vperm.xlu0 %2437, %v2376
  %v2439 = vpop.permute.xlu0 %2438
  %2442 = vset.pattern.permute.xlu0 0
  %2443 = vperm.xlu0 %2442, %v2377
  %v2444 = vpop.permute.xlu0 %2443
  %2447 = vset.pattern.permute.xlu0 0
  %2448 = vperm.xlu0 %2447, %v2378
  %v2449 = vpop.permute.xlu0 %2448
  %2452 = vset.pattern.permute.xlu0 0
  %2453 = vperm.xlu0 %2452, %v2379
  %v2454 = vpop.permute.xlu0 %2453
  %2457 = vset.pattern.permute.xlu0 0
  %2458 = vperm.xlu0 %2457, %v2380
  %v2459 = vpop.permute.xlu0 %2458
  %2462 = vset.pattern.permute.xlu0 0
  %2463 = vperm.xlu0 %2462, %v2381
  %v2464 = vpop.permute.xlu0 %2463
  %2467 = vset.pattern.permute.xlu0 0
  %2468 = vperm.xlu0 %2467, %v2382
  %v2469 = vpop.permute.xlu0 %2468
  %2472 = vset.pattern.permute.xlu0 0
  %2473 = vperm.xlu0 %2472, %v2383
  %v2474 = vpop.permute.xlu0 %2473
  %2477 = vset.pattern.permute.xlu0 0
  %2478 = vperm.xlu0 %2477, %v2384
  %v2479 = vpop.permute.xlu0 %2478
  %2482 = vset.pattern.permute.xlu0 0
  %2483 = vperm.xlu0 %2482, %v2385
  %v2484 = vpop.permute.xlu0 %2483
  %2487 = vset.pattern.permute.xlu0 0
  %2488 = vperm.xlu0 %2487, %v2386
  %v2489 = vpop.permute.xlu0 %2488
  %2492 = vset.pattern.permute.xlu0 0
  %2493 = vperm.xlu0 %2492, %v2387
  %v2494 = vpop.permute.xlu0 %2493
  %2497 = vset.pattern.permute.xlu0 0
  %2498 = vperm.xlu0 %2497, %v2388
  %v2499 = vpop.permute.xlu0 %2498
  %2502 = vset.pattern.permute.xlu0 0
  %2503 = vperm.xlu0 %2502, %v2389
  %v2504 = vpop.permute.xlu0 %2503
  %2507 = vset.pattern.permute.xlu0 0
  %2508 = vperm.xlu0 %2507, %v2390
  %v2509 = vpop.permute.xlu0 %2508
  %2512 = vset.pattern.permute.xlu0 0
  %2513 = vperm.xlu0 %2512, %v2391
  %v2514 = vpop.permute.xlu0 %2513
  %2517 = vset.pattern.permute.xlu0 0
  %2518 = vperm.xlu0 %2517, %v2392
  %v2519 = vpop.permute.xlu0 %2518
  %2522 = vset.pattern.permute.xlu0 0
  %2523 = vperm.xlu0 %2522, %v2393
  %v2524 = vpop.permute.xlu0 %2523
  %2527 = vset.pattern.permute.xlu0 0
  %2528 = vperm.xlu0 %2527, %v2394
  %v2529 = vpop.permute.xlu0 %2528
  %2532 = vset.pattern.permute.xlu0 0
  %2533 = vperm.xlu0 %2532, %v2395
  %v2534 = vpop.permute.xlu0 %2533
  %2537 = vset.pattern.permute.xlu0 0
  %2538 = vperm.xlu0 %2537, %v2396
  %v2539 = vpop.permute.xlu0 %2538
  %2542 = vset.pattern.permute.xlu0 0
  %2543 = vperm.xlu0 %2542, %v2397
  %v2544 = vpop.permute.xlu0 %2543
  %2547 = vset.pattern.permute.xlu0 0
  %2548 = vperm.xlu0 %2547, %v2398
  %v2549 = vpop.permute.xlu0 %2548
  %2552 = vset.pattern.permute.xlu0 0
  %2553 = vperm.xlu0 %2552, %v2399
  %v2554 = vpop.permute.xlu0 %2553
  %2557 = vset.pattern.permute.xlu0 0
  %2558 = vperm.xlu0 %2557, %v2400
  %v2559 = vpop.permute.xlu0 %2558
  %v2561 = vmul.f32 %v2337, %v2404
  %v2562 = vmul.f32 %v2338, %v2409
  %v2563 = vmul.f32 %v2339, %v2414
  %v2564 = vmul.f32 %v2340, %v2419
  %v2565 = vmul.f32 %v2341, %v2424
  %v2566 = vmul.f32 %v2342, %v2429
  %v2567 = vmul.f32 %v2343, %v2434
  %v2568 = vmul.f32 %v2344, %v2439
  %v2569 = vmul.f32 %v2345, %v2444
  %v2570 = vmul.f32 %v2346, %v2449
  %v2571 = vmul.f32 %v2347, %v2454
  %v2572 = vmul.f32 %v2348, %v2459
  %v2573 = vmul.f32 %v2349, %v2464
  %v2574 = vmul.f32 %v2350, %v2469
  %v2575 = vmul.f32 %v2351, %v2474
  %v2576 = vmul.f32 %v2352, %v2479
  %v2577 = vmul.f32 %v2353, %v2484
  %v2578 = vmul.f32 %v2354, %v2489
  %v2579 = vmul.f32 %v2355, %v2494
  %v2580 = vmul.f32 %v2356, %v2499
  %v2581 = vmul.f32 %v2357, %v2504
  %v2582 = vmul.f32 %v2358, %v2509
  %v2583 = vmul.f32 %v2359, %v2514
  %v2584 = vmul.f32 %v2360, %v2519
  %v2585 = vmul.f32 %v2361, %v2524
  %v2586 = vmul.f32 %v2362, %v2529
  %v2587 = vmul.f32 %v2363, %v2534
  %v2588 = vmul.f32 %v2364, %v2539
  %v2589 = vmul.f32 %v2365, %v2544
  %v2590 = vmul.f32 %v2366, %v2549
  %v2591 = vmul.f32 %v2367, %v2554
  %v2592 = vmul.f32 %v2368, %v2559
  %v2593 = vadd.f32 %v2561, %v2562
  %v2594 = vadd.f32 %v2593, %v2563
  %v2595 = vadd.f32 %v2594, %v2564
  %v2596 = vadd.f32 %v2595, %v2565
  %v2597 = vadd.f32 %v2596, %v2566
  %v2598 = vadd.f32 %v2597, %v2567
  %v2599 = vadd.f32 %v2598, %v2568
  %v2600 = vadd.f32 %v2599, %v2569
  %v2601 = vadd.f32 %v2600, %v2570
  %v2602 = vadd.f32 %v2601, %v2571
  %v2603 = vadd.f32 %v2602, %v2572
  %v2604 = vadd.f32 %v2603, %v2573
  %v2605 = vadd.f32 %v2604, %v2574
  %v2606 = vadd.f32 %v2605, %v2575
  %v2607 = vadd.f32 %v2606, %v2576
  %v2608 = vadd.f32 %v2607, %v2577
  %v2609 = vadd.f32 %v2608, %v2578
  %v2610 = vadd.f32 %v2609, %v2579
  %v2611 = vadd.f32 %v2610, %v2580
  %v2612 = vadd.f32 %v2611, %v2581
  %v2613 = vadd.f32 %v2612, %v2582
  %v2614 = vadd.f32 %v2613, %v2583
  %v2615 = vadd.f32 %v2614, %v2584
  %v2616 = vadd.f32 %v2615, %v2585
  %v2617 = vadd.f32 %v2616, %v2586
  %v2618 = vadd.f32 %v2617, %v2587
  %v2619 = vadd.f32 %v2618, %v2588
  %v2620 = vadd.f32 %v2619, %v2589
  %v2621 = vadd.f32 %v2620, %v2590
  %v2622 = vadd.f32 %v2621, %v2591
  %v2623 = vadd.f32 %v2622, %v2592
  %v2624 = vrot.slane %v2623, 4
  %v2625 = vadd.f32 %v2623, %v2624
  %v2626 = vrot.slane %v2625, 2
  %v2627 = vadd.f32 %v2625, %v2626
  %v2628 = vrot.slane %v2627, 1
  %v2629 = vadd.f32 %v2627, %v2628
  %v2630 = vld [vmem:[#allocation2] sm:$0x1]
  %2632 = vset.pattern.permute.xlu0 0
  %2633 = vperm.xlu0 %2632, %v2630
  %v2634 = vpop.permute.xlu0 %2633
  %v2636 = vlaneseq
  %v2637 = vshrl.u32 %v2636, 7
  %v2638 = vsub.s32 0, %v2637
  %v2639 = vrot.slane %v2634, %v2638
  %v2640 = vadd.f32 %v2629, %v2639
  %v2641 = vxor.u32 %v2640, 2147483648
  %v2642 = vmul.f32 %v2641, 1.442695
  %v2643 = vpow.pop %v2642
  %v2644 = vadd.f32 %v2643, 1.0
  %v2645 = vrcp.pop %v2644
  %v2646 = vmul.f32 1.0, %v2645
  %2647 = vst [vmem:[%s11] sm:$0x1] %v2646
  // Predicated region
  $region46: #{_pallas_forward.1} parent=0 // pred_check
    _
  $region47: #{_pallas_forward.1} parent=0 // pred_check_branch
    %2649 = sbr.rel (0) target = $region49
  $region48: #{_pallas_forward.1} parent=0 // pred_region
    _
  $region49: #{_pallas_forward.1} parent=0 // pred_fallthru
    _
  // Predicated region
  $region50: #{_pallas_forward.1} parent=0 // pred_check
    _
  $region51: #{_pallas_forward.1} parent=0 // pred_check_branch
    %2651 = sbr.rel (0) target = $region53
  $region52: #{_pallas_forward.1} parent=0 // pred_region
    _
  $region53: #{_pallas_forward.1} parent=0 // pred_fallthru
    _

</llo_original>
